<compile_context>
chip_gen: v5e
topology: v5e:2x2
jax: 0.10.0
libtpu: 0.0.40
codegen_flags: <defaults>
</compile_context>

<pallas_src>
import math

import jax
import jax.numpy as jnp
from jax.experimental import pallas as pl
from jax.experimental.pallas import tpu as pltpu

LANES = 128
SUBLANES = 8


def _round_up(n, m):
    return ((n + m - 1) // m) * m


# ------------------------------------------------------------------
# Elementwise helpers (only ops with guaranteed Mosaic lowerings)
# ------------------------------------------------------------------
def _erf(x):
    # Abramowitz & Stegun 7.1.26 rational approximation; the divide is replaced by an
    # approx EUP reciprocal (~1e-4 rel), keeping the VPU slot free in the GELU phase.
    a1, a2, a3, a4, a5 = 0.254829592, -0.284496736, 1.421413741, -1.453152027, 1.061405429
    p = 0.3275911
    s = jnp.where(x >= 0.0, 1.0, -1.0)
    z = jnp.abs(x)
    t = pl.reciprocal(1.0 + p * z, approx=True)
    poly = ((((a5 * t + a4) * t + a3) * t + a2) * t + a1) * t
    return s * (1.0 - poly * jnp.exp(-z * z))


def _gelu(x):
    return 0.5 * x * (1.0 + _erf(x * 0.7071067811865476))


# ------------------------------------------------------------------
# Kernel factory (closes over the static slab layout)
# ------------------------------------------------------------------
def _make_kernel(layout, dims):
    c_feat = dims['c_feat']
    h_te = dims['h_te']
    hidden = dims['hidden']
    h2 = hidden // 2
    G = 8 * h2                       # packed gate width of the merged layer-0 cell

    def kernel(x_ref, w_ref, out_ref):
        def seg(name):
            r0, r, c = layout[name]
            return w_ref[r0:r0 + r, :c]

        x = x_ref[...]                                   # (B, T, in_ch) f32
        B, T, _ = x.shape
        BT = B * T

        # ---------- fused conv + time-encoder branches (block-diagonal weights) --------
        def conv_gelu(inp, w, b):
            Bi, Ti, Ci = inp.shape
            zp = jnp.zeros((Bi, 1, Ci), jnp.float32)
            xm1 = jnp.concatenate([zp, inp[:, :Ti - 1, :]], axis=1)   # x[t-1]
            xp1 = jnp.concatenate([inp[:, 1:, :], zp], axis=1)        # x[t+1]
            taps = jnp.concatenate([xm1, inp, xp1], axis=-1).reshape(Bi * Ti, 3 * Ci)
            y = jnp.dot(taps, w, preferred_element_type=jnp.float32) + b
            return _gelu(y).reshape(Bi, Ti, w.shape[1])

        y = conv_gelu(x, seg('conv_w1'), seg('conv_b1'))      # (B, T, hidden + h_te)
        y = conv_gelu(y, seg('conv_w2'), seg('conv_b2'))
        pooled = jnp.mean(y, axis=1)                          # (B, hidden + h_te)
        conv_out = pooled[:, :hidden]                         # (B, hidden)
        time_out = pooled[:, hidden:hidden + h_te]            # (B, h_te)

        # ---------- 2-layer bidirectional LSTM; only lstm_out[:, -1, :] is needed ------
        x_feat_flat = x[:, :, :c_feat].reshape(BT, c_feat)
        # Input projection hoisted out of the recurrence.  The fwd/bwd per-step column
        # selection is folded into the packed weights -> no select on the serial chain.
        gx_f = (jnp.dot(x_feat_flat, seg('lstm0_wih_f'),
                        preferred_element_type=jnp.float32)
                + seg('lstm0_b')).reshape(B, T, G)
        gx_b = jnp.dot(x_feat_flat, seg('lstm0_wih_b'),
                       preferred_element_type=jnp.float32).reshape(B, T, G)
        # Per-step gate inputs precomputed off the recurrent critical path.
        gx_steps = [gx_f[:, s] + gx_b[:, T - 1 - s] for s in range(T)]

        whh0 = seg('lstm0_whh')                               # (2*h2, 8*h2), block struct.
        h_cat = jnp.zeros((B, 2 * h2), jnp.float32)           # [h_fwd | h_bwd]
        c_cat = jnp.zeros((B, 2 * h2), jnp.float32)
        h_hist = []
        for s in range(T):                                    # T small & static -> unrolled
            gates = gx_steps[s] + jnp.dot(h_cat, whh0, preferred_element_type=jnp.float32)
            sig = jax.nn.sigmoid(gates[:, :6 * h2])           # [i_f i_b | f_f f_b | o_f o_b]
            g = jnp.tanh(gates[:, 6 * h2:])                   # [g_f g_b]
            c_cat = sig[:, 2 * h2:4 * h2] * c_cat + sig[:, :2 * h2] * g
            h_cat = sig[:, 4 * h2:] * jnp.tanh(c_cat)
            h_hist.append(h_cat)

        # Layer-1 gate inputs via two split matmuls on the stacked step-major history
        # (no per-time lane concats).  Row s*B+b of H == merged state after step s, i.e.
        # h_fwd(time s) in the left half and h_bwd(time T-1-s) in the right half.
        H = jnp.concatenate(h_hist, axis=0)                   # (T*B, 2*h2)
        wih1 = seg('lstm1_wih')                               # (2*h2, 8*h2)
        g1_f = jnp.dot(H[:, :h2], wih1[:h2, :], preferred_element_type=jnp.float32)
        g1_b = jnp.dot(H[:, h2:], wih1[h2:, :], preferred_element_type=jnp.float32)
        gx1_steps = [g1_f[t * B:(t + 1) * B] + g1_b[(T - 1 - t) * B:(T - t) * B]
                     for t in range(T)]

        # Layer 1, forward direction (full recurrence; only the final hidden is needed).
        whh1f = seg('lstm1_whh_f')
        b1f = seg('lstm1_b_f')
        h1 = jnp.zeros((B, h2), jnp.float32)
        c1 = jnp.zeros((B, h2), jnp.float32)
        for t in range(T):
            gates = gx1_steps[t][:, :4 * h2] + b1f + jnp.dot(
                h1, whh1f, preferred_element_type=jnp.float32)
            sig = jax.nn.sigmoid(gates[:, :3 * h2])           # [i f o]
            g = jnp.tanh(gates[:, 3 * h2:])
            c1 = sig[:, h2:2 * h2] * c1 + sig[:, :h2] * g
            h1 = sig[:, 2 * h2:] * jnp.tanh(c1)

        # Layer 1, backward direction at t = T-1 is its first reverse step from a zero
        # state, so the recurrent term vanishes (h_prev = c_prev = 0).
        gates_b = gx1_steps[T - 1][:, 4 * h2:] + seg('lstm1_b_b')
        sig_b = jax.nn.sigmoid(gates_b[:, :3 * h2])
        g_b = jnp.tanh(gates_b[:, 3 * h2:])
        h1_b = sig_b[:, 2 * h2:] * jnp.tanh(sig_b[:, :h2] * g_b)

        # ---------- output head: Linear -> GELU -> Linear -> ReLU ----------
        feat = jnp.concatenate([h1, h1_b, conv_out, time_out], axis=-1)   # (B, 2*hid+h_te)
        hmid = _gelu(jnp.dot(feat, seg('out_w1'), preferred_element_type=jnp.float32)
                     + seg('out_b1'))
        # Read out_w2 / out_b2 at full padded lane width (zero beyond out_ch) so the
        # final store is a single lane-dense (B, 128) vst; wrapper slices [:, :out_ch].
        r0, r, _ = layout['out_w2']
        ow2 = w_ref[r0:r0 + r, :]
        r0b, rb, _ = layout['out_b2']
        ob2 = w_ref[r0b:r0b + rb, :]
        out_ref[...] = jnp.maximum(
            jnp.dot(hmid, ow2, preferred_element_type=jnp.float32) + ob2, 0.0)

    return kernel


# ------------------------------------------------------------------
# Wrapper: one pallas_call, x + one weight slab, everything VMEM resident
# ------------------------------------------------------------------
def make_time_series_forward(layout, dims):
    kernel = _make_kernel(layout, dims)
    out_ch = dims['out_ch']

    @jax.jit
    def forward(x, slab):
        B = x.shape[0]
        out_pad = pl.pallas_call(
            kernel,
            out_shape=jax.ShapeDtypeStruct((B, LANES), jnp.float32),
            in_specs=[pl.BlockSpec(memory_space=pltpu.MemorySpace.VMEM),
                      pl.BlockSpec(memory_space=pltpu.MemorySpace.VMEM)],
            out_specs=pl.BlockSpec(memory_space=pltpu.MemorySpace.VMEM),
        )(x.astype(jnp.float32), slab)
        return out_pad[:, :out_ch]

    return forward


# ------------------------------------------------------------------
# Parameter packing (torch layouts -> kernel layouts) and init
# ------------------------------------------------------------------
def _reorder_ifgo_to_ifog(m, h2):
    # torch gate order [i, f, g, o] -> kernel order [i, f, o, g] along the last axis
    i = m[..., 0 * h2:1 * h2]
    f = m[..., 1 * h2:2 * h2]
    g = m[..., 2 * h2:3 * h2]
    o = m[..., 3 * h2:4 * h2]
    return jnp.concatenate([i, f, o, g], axis=-1)


def _pack_bidir_layer(wih_f, wih_b, whh_f, whh_b, b_f, b_b, h2):
    """Pack a bidirectional LSTM layer so both directions run as one merged cell.

    Inputs are per-direction "math layout" weights: wih (in_dim, 4*h2) == torch W_ih.T,
    whh (h2, 4*h2) == torch W_hh.T, b (1, 4*h2) == (b_ih + b_hh), gate order [i, f, g, o].
    Packed gate-column layout (width 8*h2): [i_f i_b | f_f f_b | o_f o_b | g_f g_b].
    """
    wf = _reorder_ifgo_to_ifog(wih_f, h2)
    wb = _reorder_ifgo_to_ifog(wih_b, h2)
    hf = _reorder_ifgo_to_ifog(whh_f, h2)
    hb = _reorder_ifgo_to_ifog(whh_b, h2)
    bf = _reorder_ifgo_to_ifog(b_f, h2)
    bb = _reorder_ifgo_to_ifog(b_b, h2)
    z = jnp.zeros((h2, h2), jnp.float32)
    wih_cols, whh_cols, b_cols = [], [], []
    for k in range(4):
        sl = slice(k * h2, (k + 1) * h2)
        wih_cols += [wf[:, sl], wb[:, sl]]
        whh_cols += [jnp.concatenate([hf[:, sl], z], axis=0),    # h_fwd rows -> *_f cols
                     jnp.concatenate([z, hb[:, sl]], axis=0)]    # h_bwd rows -> *_b cols
        b_cols += [bf[:, sl], bb[:, sl]]
    return (jnp.concatenate(wih_cols, axis=1),
            jnp.concatenate(whh_cols, axis=1),
            jnp.concatenate(b_cols, axis=1))


def _pack_slab(named_mats):
    """Pack (name, 2-D matrix) pairs into one (rows, 128) f32 slab.

    Each matrix is zero-padded to 128 lanes and its row offset is aligned to 8 sublanes.
    Returns (slab, layout) with layout[name] = (row_offset, rows, cols).
    """
    layout, pieces, row = {}, [], 0
    for name, a in named_mats:
        a = jnp.asarray(a, jnp.float32)
        r, c = a.shape
        rp = _round_up(r, SUBLANES)
        padded = jnp.zeros((rp, LANES), jnp.float32).at[:r, :c].set(a)
        layout[name] = (row, r, c)
        pieces.append(padded)
        row += rp
    return jnp.concatenate(pieces, axis=0), layout


def init_params(key, in_ch=28, out_ch=6, hidden=32):
    c_feat = in_ch - 24
    t_ch = 24
    h2 = hidden // 2
    h_te = int(math.sqrt(t_ch))          # OperationTimeEncoder hidden = int(sqrt(24)) = 4
    keys = iter(jax.random.split(key, 32))

    def w(shape, scale=0.1):
        return (scale * jax.random.normal(next(keys), shape)).astype(jnp.float32)

    # --- conv branch + time encoder: tap-stacked (3*Cin, Cout) weights, then fused
    #     block-diagonally per tap so both branches share one matmul per layer ---
    cw1, cb1 = w((3 * c_feat, hidden)), w((1, hidden))
    cw2, cb2 = w((3 * hidden, hidden)), w((1, hidden))
    tw1, tb1 = w((3 * t_ch, h_te)), w((1, h_te))
    tw2, tb2 = w((3 * h_te, h_te)), w((1, h_te))

    def fuse_conv(wa, wb, cin_a, cin_b):
        ca, cb_ = wa.shape[1], wb.shape[1]
        taps = []
        for j in range(3):
            blk = jnp.zeros((cin_a + cin_b, ca + cb_), jnp.float32)
            blk = blk.at[:cin_a, :ca].set(wa[j * cin_a:(j + 1) * cin_a])
            blk = blk.at[cin_a:, ca:].set(wb[j * cin_b:(j + 1) * cin_b])
            taps.append(blk)
        return jnp.concatenate(taps, axis=0)

    conv_w1 = fuse_conv(cw1, tw1, c_feat, t_ch)              # (3*in_ch, hidden+h_te)
    conv_b1 = jnp.concatenate([cb1, tb1], axis=1)
    conv_w2 = fuse_conv(cw2, tw2, hidden, h_te)              # (3*(hidden+h_te), hidden+h_te)
    conv_b2 = jnp.concatenate([cb2, tb2], axis=1)

    # --- LSTM: per-direction "math layout" weights (W.T, torch gate order [i,f,g,o],
    #     biases folded b_ih + b_hh), then packed for the merged kernel cell ---
    wih0f, whh0f, b0f = w((c_feat, 4 * h2)), w((h2, 4 * h2)), w((1, 4 * h2))
    wih0b, whh0b, b0b = w((c_feat, 4 * h2)), w((h2, 4 * h2)), w((1, 4 * h2))
    wih1f, whh1f, b1f = w((2 * h2, 4 * h2)), w((h2, 4 * h2)), w((1, 4 * h2))
    wih1b, b1b = w((2 * h2, 4 * h2)), w((1, 4 * h2))
    # layer-1 backward recurrent weight is unused for lstm_out[:, -1, :].

    wih0, whh0, b0 = _pack_bidir_layer(wih0f, wih0b, whh0f, whh0b, b0f, b0b, h2)
    # Fold the per-step fwd/bwd gate-column selection into the weights.
    col = jnp.arange(8 * h2)
    fwd_cols = ((col % (2 * h2)) < h2).astype(jnp.float32)[None, :]
    lstm0_wih_fcols = wih0 * fwd_cols
    lstm0_wih_bcols = wih0 * (1.0 - fwd_cols)

    wih1 = jnp.concatenate([_reorder_ifgo_to_ifog(wih1f, h2),
                            _reorder_ifgo_to_ifog(wih1b, h2)], axis=1)

    # --- output head (Linear weights stored transposed: (Din, Dout) = torch weight.T) ---
    ow1, ob1 = w((2 * hidden + h_te, hidden)), w((1, hidden))
    ow2, ob2 = w((hidden, out_ch)), w((1, out_ch))

    slab, layout = _pack_slab([
        ('conv_w1', conv_w1), ('conv_b1', conv_b1),
        ('conv_w2', conv_w2), ('conv_b2', conv_b2),
        ('lstm0_wih_f', lstm0_wih_fcols), ('lstm0_wih_b', lstm0_wih_bcols),
        ('lstm0_whh', whh0), ('lstm0_b', b0),
        ('lstm1_wih', wih1), ('lstm1_whh_f', _reorder_ifgo_to_ifog(whh1f, h2)),
        ('lstm1_b_f', _reorder_ifgo_to_ifog(b1f, h2)),
        ('lstm1_b_b', _reorder_ifgo_to_ifog(b1b, h2)),
        ('out_w1', ow1), ('out_b1', ob1),
        ('out_w2', ow2), ('out_b2', ob2),
    ])
    dims = dict(in_ch=in_ch, c_feat=c_feat, h_te=h_te, hidden=hidden, out_ch=out_ch)
    return slab, layout, dims


if __name__ == "__main__":
    key = jax.random.PRNGKey(0)
    kx, kp = jax.random.split(key)
    B, T, in_ch, out_ch, hidden = 2, 8, 28, 6, 32
    x = jax.random.normal(kx, (B, T, in_ch), dtype=jnp.float32)
    slab, layout, dims = init_params(kp, in_ch=in_ch, out_ch=out_ch, hidden=hidden)
    forward = make_time_series_forward(layout, dims)
    y = forward(x, slab)
    jax.block_until_ready(y)
    assert y.shape == (B, out_ch)
    assert bool(jnp.all(jnp.isfinite(y)))
    print("KERNEL_OK")
</pallas_src>

<mosaic_0001>
module attributes {stable_mosaic.version = 11 : i64} {
  func.func @kernel(%arg0: memref<2x8x28xf32, #tpu.memory_space<vmem>>, %arg1: memref<456x128xf32, #tpu.memory_space<vmem>>, %arg2: memref<2x128xf32, #tpu.memory_space<vmem>>) attributes {dimension_semantics = [], scalar_prefetch = 0 : i64, scratch_operands = 0 : i64, tpu.core_type = #tpu.core_type<tc>} {
    %c0 = arith.constant 0 : index
    %c0_0 = arith.constant 0 : index
    %c0_1 = arith.constant 0 : index
    %0 = vector.load %arg0[%c0, %c0_0, %c0_1] : memref<2x8x28xf32, #tpu.memory_space<vmem>>, vector<2x8x28xf32>
    %c0_2 = arith.constant 0 : index
    %c0_3 = arith.constant 0 : index
    %1 = vector.load %arg1[%c0_2, %c0_3] : memref<456x128xf32, #tpu.memory_space<vmem>>, vector<84x36xf32>
    %c88 = arith.constant 88 : index
    %c0_4 = arith.constant 0 : index
    %2 = vector.load %arg1[%c88, %c0_4] : memref<456x128xf32, #tpu.memory_space<vmem>>, vector<1x36xf32>
    %cst = arith.constant 0.000000e+00 : f32
    %3 = vector.broadcast %cst : f32 to vector<2x1x28xf32>
    %4 = vector.extract_strided_slice %0 {offsets = [0, 0, 0], sizes = [2, 7, 28], strides = [1, 1, 1]} : vector<2x8x28xf32> to vector<2x7x28xf32>
    %5 = tpu.concatenate %3, %4 in 1 : vector<2x1x28xf32>, vector<2x7x28xf32> -> vector<2x8x28xf32>
    %6 = vector.extract_strided_slice %0 {offsets = [0, 1, 0], sizes = [2, 7, 28], strides = [1, 1, 1]} : vector<2x8x28xf32> to vector<2x7x28xf32>
    %7 = tpu.concatenate %6, %3 in 1 : vector<2x7x28xf32>, vector<2x1x28xf32> -> vector<2x8x28xf32>
    %8 = tpu.concatenate %5, %0, %7 in 2 : vector<2x8x28xf32>, vector<2x8x28xf32>, vector<2x8x28xf32> -> vector<2x8x84xf32>
    %9 = vector.shape_cast %8 : vector<2x8x84xf32> to vector<16x84xf32>
    %cst_5 = arith.constant dense<0.000000e+00> : vector<16x36xf32>
    %10 = tpu.matmul %9, %1, %cst_5 {dimension_numbers = #tpu.dot_dimension_numbers<[1], [0], [0], [1], [0, 0, 1, 1], [], []>} : vector<16x84xf32>, vector<84x36xf32>, vector<16x36xf32> -> vector<16x36xf32>
    %11 = vector.broadcast %2 : vector<1x36xf32> to vector<16x36xf32>
    %12 = arith.addf %10, %11 : vector<16x36xf32>
    %cst_6 = arith.constant 5.000000e-01 : f32
    %13 = vector.broadcast %cst_6 : f32 to vector<16x36xf32>
    %14 = arith.mulf %13, %12 : vector<16x36xf32>
    %cst_7 = arith.constant 0.707106769 : f32
    %15 = vector.broadcast %cst_7 : f32 to vector<16x36xf32>
    %16 = arith.mulf %12, %15 : vector<16x36xf32>
    %cst_8 = arith.constant 0.000000e+00 : f32
    %17 = vector.broadcast %cst_8 : f32 to vector<16x36xf32>
    %18 = arith.cmpf oge, %16, %17 : vector<16x36xf32>
    %cst_9 = arith.constant 1.000000e+00 : f32
    %cst_10 = arith.constant -1.000000e+00 : f32
    %19 = vector.broadcast %cst_9 : f32 to vector<16x36xf32>
    %20 = vector.broadcast %cst_10 : f32 to vector<16x36xf32>
    %21 = arith.select %18, %19, %20 : vector<16x36xi1>, vector<16x36xf32>
    %22 = math.absf %16 : vector<16x36xf32>
    %cst_11 = arith.constant 0.327591091 : f32
    %23 = vector.broadcast %cst_11 : f32 to vector<16x36xf32>
    %24 = arith.mulf %23, %22 : vector<16x36xf32>
    %cst_12 = arith.constant 1.000000e+00 : f32
    %25 = vector.broadcast %cst_12 : f32 to vector<16x36xf32>
    %26 = arith.addf %25, %24 : vector<16x36xf32>
    %27 = tpu.reciprocal %26 {approx = true} : vector<16x36xf32> -> vector<16x36xf32>
    %cst_13 = arith.constant 1.06140542 : f32
    %28 = vector.broadcast %cst_13 : f32 to vector<16x36xf32>
    %29 = arith.mulf %28, %27 : vector<16x36xf32>
    %cst_14 = arith.constant -1.45315206 : f32
    %30 = vector.broadcast %cst_14 : f32 to vector<16x36xf32>
    %31 = arith.addf %29, %30 : vector<16x36xf32>
    %32 = arith.mulf %31, %27 : vector<16x36xf32>
    %cst_15 = arith.constant 1.42141378 : f32
    %33 = vector.broadcast %cst_15 : f32 to vector<16x36xf32>
    %34 = arith.addf %32, %33 : vector<16x36xf32>
    %35 = arith.mulf %34, %27 : vector<16x36xf32>
    %cst_16 = arith.constant -0.284496725 : f32
    %36 = vector.broadcast %cst_16 : f32 to vector<16x36xf32>
    %37 = arith.addf %35, %36 : vector<16x36xf32>
    %38 = arith.mulf %37, %27 : vector<16x36xf32>
    %cst_17 = arith.constant 0.254829586 : f32
    %39 = vector.broadcast %cst_17 : f32 to vector<16x36xf32>
    %40 = arith.addf %38, %39 : vector<16x36xf32>
    %41 = arith.mulf %40, %27 : vector<16x36xf32>
    %cst_18 = arith.constant 0.000000e+00 : f32
    %42 = vector.broadcast %cst_18 : f32 to vector<16x36xf32>
    %43 = arith.subf %42, %22 : vector<16x36xf32>
    %44 = arith.mulf %43, %22 : vector<16x36xf32>
    %45 = math.exp %44 : vector<16x36xf32>
    %46 = arith.mulf %41, %45 : vector<16x36xf32>
    %cst_19 = arith.constant 1.000000e+00 : f32
    %47 = vector.broadcast %cst_19 : f32 to vector<16x36xf32>
    %48 = arith.subf %47, %46 : vector<16x36xf32>
    %49 = arith.mulf %21, %48 : vector<16x36xf32>
    %cst_20 = arith.constant 1.000000e+00 : f32
    %50 = vector.broadcast %cst_20 : f32 to vector<16x36xf32>
    %51 = arith.addf %50, %49 : vector<16x36xf32>
    %52 = arith.mulf %14, %51 : vector<16x36xf32>
    %53 = vector.shape_cast %52 : vector<16x36xf32> to vector<2x8x36xf32>
    %c96 = arith.constant 96 : index
    %c0_21 = arith.constant 0 : index
    %54 = vector.load %arg1[%c96, %c0_21] : memref<456x128xf32, #tpu.memory_space<vmem>>, vector<108x36xf32>
    %c208 = arith.constant 208 : index
    %c0_22 = arith.constant 0 : index
    %55 = vector.load %arg1[%c208, %c0_22] : memref<456x128xf32, #tpu.memory_space<vmem>>, vector<1x36xf32>
    %cst_23 = arith.constant 0.000000e+00 : f32
    %56 = vector.broadcast %cst_23 : f32 to vector<2x1x36xf32>
    %57 = vector.extract_strided_slice %53 {offsets = [0, 0, 0], sizes = [2, 7, 36], strides = [1, 1, 1]} : vector<2x8x36xf32> to vector<2x7x36xf32>
    %58 = tpu.concatenate %56, %57 in 1 : vector<2x1x36xf32>, vector<2x7x36xf32> -> vector<2x8x36xf32>
    %59 = vector.extract_strided_slice %53 {offsets = [0, 1, 0], sizes = [2, 7, 36], strides = [1, 1, 1]} : vector<2x8x36xf32> to vector<2x7x36xf32>
    %60 = tpu.concatenate %59, %56 in 1 : vector<2x7x36xf32>, vector<2x1x36xf32> -> vector<2x8x36xf32>
    %61 = tpu.concatenate %58, %53, %60 in 2 : vector<2x8x36xf32>, vector<2x8x36xf32>, vector<2x8x36xf32> -> vector<2x8x108xf32>
    %62 = vector.shape_cast %61 : vector<2x8x108xf32> to vector<16x108xf32>
    %cst_24 = arith.constant dense<0.000000e+00> : vector<16x36xf32>
    %63 = tpu.matmul %62, %54, %cst_24 {dimension_numbers = #tpu.dot_dimension_numbers<[1], [0], [0], [1], [0, 0, 1, 1], [], []>} : vector<16x108xf32>, vector<108x36xf32>, vector<16x36xf32> -> vector<16x36xf32>
    %64 = vector.broadcast %55 : vector<1x36xf32> to vector<16x36xf32>
    %65 = arith.addf %63, %64 : vector<16x36xf32>
    %cst_25 = arith.constant 5.000000e-01 : f32
    %66 = vector.broadcast %cst_25 : f32 to vector<16x36xf32>
    %67 = arith.mulf %66, %65 : vector<16x36xf32>
    %cst_26 = arith.constant 0.707106769 : f32
    %68 = vector.broadcast %cst_26 : f32 to vector<16x36xf32>
    %69 = arith.mulf %65, %68 : vector<16x36xf32>
    %cst_27 = arith.constant 0.000000e+00 : f32
    %70 = vector.broadcast %cst_27 : f32 to vector<16x36xf32>
    %71 = arith.cmpf oge, %69, %70 : vector<16x36xf32>
    %cst_28 = arith.constant 1.000000e+00 : f32
    %cst_29 = arith.constant -1.000000e+00 : f32
    %72 = vector.broadcast %cst_28 : f32 to vector<16x36xf32>
    %73 = vector.broadcast %cst_29 : f32 to vector<16x36xf32>
    %74 = arith.select %71, %72, %73 : vector<16x36xi1>, vector<16x36xf32>
    %75 = math.absf %69 : vector<16x36xf32>
    %cst_30 = arith.constant 0.327591091 : f32
    %76 = vector.broadcast %cst_30 : f32 to vector<16x36xf32>
    %77 = arith.mulf %76, %75 : vector<16x36xf32>
    %cst_31 = arith.constant 1.000000e+00 : f32
    %78 = vector.broadcast %cst_31 : f32 to vector<16x36xf32>
    %79 = arith.addf %78, %77 : vector<16x36xf32>
    %80 = tpu.reciprocal %79 {approx = true} : vector<16x36xf32> -> vector<16x36xf32>
    %cst_32 = arith.constant 1.06140542 : f32
    %81 = vector.broadcast %cst_32 : f32 to vector<16x36xf32>
    %82 = arith.mulf %81, %80 : vector<16x36xf32>
    %cst_33 = arith.constant -1.45315206 : f32
    %83 = vector.broadcast %cst_33 : f32 to vector<16x36xf32>
    %84 = arith.addf %82, %83 : vector<16x36xf32>
    %85 = arith.mulf %84, %80 : vector<16x36xf32>
    %cst_34 = arith.constant 1.42141378 : f32
    %86 = vector.broadcast %cst_34 : f32 to vector<16x36xf32>
    %87 = arith.addf %85, %86 : vector<16x36xf32>
    %88 = arith.mulf %87, %80 : vector<16x36xf32>
    %cst_35 = arith.constant -0.284496725 : f32
    %89 = vector.broadcast %cst_35 : f32 to vector<16x36xf32>
    %90 = arith.addf %88, %89 : vector<16x36xf32>
    %91 = arith.mulf %90, %80 : vector<16x36xf32>
    %cst_36 = arith.constant 0.254829586 : f32
    %92 = vector.broadcast %cst_36 : f32 to vector<16x36xf32>
    %93 = arith.addf %91, %92 : vector<16x36xf32>
    %94 = arith.mulf %93, %80 : vector<16x36xf32>
    %cst_37 = arith.constant 0.000000e+00 : f32
    %95 = vector.broadcast %cst_37 : f32 to vector<16x36xf32>
    %96 = arith.subf %95, %75 : vector<16x36xf32>
    %97 = arith.mulf %96, %75 : vector<16x36xf32>
    %98 = math.exp %97 : vector<16x36xf32>
    %99 = arith.mulf %94, %98 : vector<16x36xf32>
    %cst_38 = arith.constant 1.000000e+00 : f32
    %100 = vector.broadcast %cst_38 : f32 to vector<16x36xf32>
    %101 = arith.subf %100, %99 : vector<16x36xf32>
    %102 = arith.mulf %74, %101 : vector<16x36xf32>
    %cst_39 = arith.constant 1.000000e+00 : f32
    %103 = vector.broadcast %cst_39 : f32 to vector<16x36xf32>
    %104 = arith.addf %103, %102 : vector<16x36xf32>
    %105 = arith.mulf %67, %104 : vector<16x36xf32>
    %106 = vector.shape_cast %105 : vector<16x36xf32> to vector<2x8x36xf32>
    %cst_40 = arith.constant dense<0.000000e+00> : vector<2x36xf32>
    %107 = vector.multi_reduction <add>, %106, %cst_40 [1] : vector<2x8x36xf32> to vector<2x36xf32>
    %cst_41 = arith.constant 8.000000e+00 : f32
    %108 = vector.broadcast %cst_41 : f32 to vector<2x36xf32>
    %109 = arith.divf %107, %108 : vector<2x36xf32>
    %110 = vector.extract_strided_slice %109 {offsets = [0, 0], sizes = [2, 32], strides = [1, 1]} : vector<2x36xf32> to vector<2x32xf32>
    %111 = vector.extract_strided_slice %109 {offsets = [0, 32], sizes = [2, 4], strides = [1, 1]} : vector<2x36xf32> to vector<2x4xf32>
    %112 = vector.extract_strided_slice %0 {offsets = [0, 0, 0], sizes = [2, 8, 4], strides = [1, 1, 1]} : vector<2x8x28xf32> to vector<2x8x4xf32>
    %113 = vector.shape_cast %112 : vector<2x8x4xf32> to vector<16x4xf32>
    %c216 = arith.constant 216 : index
    %c0_42 = arith.constant 0 : index
    %114 = vector.load %arg1[%c216, %c0_42] : memref<456x128xf32, #tpu.memory_space<vmem>>, vector<4x128xf32>
    %cst_43 = arith.constant dense<0.000000e+00> : vector<16x128xf32>
    %115 = tpu.matmul %113, %114, %cst_43 {dimension_numbers = #tpu.dot_dimension_numbers<[1], [0], [0], [1], [0, 0, 1, 1], [], []>} : vector<16x4xf32>, vector<4x128xf32>, vector<16x128xf32> -> vector<16x128xf32>
    %c264 = arith.constant 264 : index
    %c0_44 = arith.constant 0 : index
    %116 = vector.load %arg1[%c264, %c0_44] : memref<456x128xf32, #tpu.memory_space<vmem>>, vector<1x128xf32>
    %117 = vector.broadcast %116 : vector<1x128xf32> to vector<16x128xf32>
    %118 = arith.addf %115, %117 : vector<16x128xf32>
    %119 = vector.shape_cast %118 : vector<16x128xf32> to vector<2x8x128xf32>
    %c224 = arith.constant 224 : index
    %c0_45 = arith.constant 0 : index
    %120 = vector.load %arg1[%c224, %c0_45] : memref<456x128xf32, #tpu.memory_space<vmem>>, vector<4x128xf32>
    %cst_46 = arith.constant dense<0.000000e+00> : vector<16x128xf32>
    %121 = tpu.matmul %113, %120, %cst_46 {dimension_numbers = #tpu.dot_dimension_numbers<[1], [0], [0], [1], [0, 0, 1, 1], [], []>} : vector<16x4xf32>, vector<4x128xf32>, vector<16x128xf32> -> vector<16x128xf32>
    %122 = vector.shape_cast %121 : vector<16x128xf32> to vector<2x8x128xf32>
    %123 = vector.extract_strided_slice %119 {offsets = [0, 0, 0], sizes = [2, 1, 128], strides = [1, 1, 1]} : vector<2x8x128xf32> to vector<2x1x128xf32>
    %124 = vector.shape_cast %123 : vector<2x1x128xf32> to vector<2x128xf32>
    %125 = vector.extract_strided_slice %122 {offsets = [0, 7, 0], sizes = [2, 1, 128], strides = [1, 1, 1]} : vector<2x8x128xf32> to vector<2x1x128xf32>
    %126 = vector.shape_cast %125 : vector<2x1x128xf32> to vector<2x128xf32>
    %127 = arith.addf %124, %126 : vector<2x128xf32>
    %128 = vector.extract_strided_slice %119 {offsets = [0, 1, 0], sizes = [2, 1, 128], strides = [1, 1, 1]} : vector<2x8x128xf32> to vector<2x1x128xf32>
    %129 = vector.shape_cast %128 : vector<2x1x128xf32> to vector<2x128xf32>
    %130 = vector.extract_strided_slice %122 {offsets = [0, 6, 0], sizes = [2, 1, 128], strides = [1, 1, 1]} : vector<2x8x128xf32> to vector<2x1x128xf32>
    %131 = vector.shape_cast %130 : vector<2x1x128xf32> to vector<2x128xf32>
    %132 = arith.addf %129, %131 : vector<2x128xf32>
    %133 = vector.extract_strided_slice %119 {offsets = [0, 2, 0], sizes = [2, 1, 128], strides = [1, 1, 1]} : vector<2x8x128xf32> to vector<2x1x128xf32>
    %134 = vector.shape_cast %133 : vector<2x1x128xf32> to vector<2x128xf32>
    %135 = vector.extract_strided_slice %122 {offsets = [0, 5, 0], sizes = [2, 1, 128], strides = [1, 1, 1]} : vector<2x8x128xf32> to vector<2x1x128xf32>
    %136 = vector.shape_cast %135 : vector<2x1x128xf32> to vector<2x128xf32>
    %137 = arith.addf %134, %136 : vector<2x128xf32>
    %138 = vector.extract_strided_slice %119 {offsets = [0, 3, 0], sizes = [2, 1, 128], strides = [1, 1, 1]} : vector<2x8x128xf32> to vector<2x1x128xf32>
    %139 = vector.shape_cast %138 : vector<2x1x128xf32> to vector<2x128xf32>
    %140 = vector.extract_strided_slice %122 {offsets = [0, 4, 0], sizes = [2, 1, 128], strides = [1, 1, 1]} : vector<2x8x128xf32> to vector<2x1x128xf32>
    %141 = vector.shape_cast %140 : vector<2x1x128xf32> to vector<2x128xf32>
    %142 = arith.addf %139, %141 : vector<2x128xf32>
    %143 = vector.extract_strided_slice %119 {offsets = [0, 4, 0], sizes = [2, 1, 128], strides = [1, 1, 1]} : vector<2x8x128xf32> to vector<2x1x128xf32>
    %144 = vector.shape_cast %143 : vector<2x1x128xf32> to vector<2x128xf32>
    %145 = vector.extract_strided_slice %122 {offsets = [0, 3, 0], sizes = [2, 1, 128], strides = [1, 1, 1]} : vector<2x8x128xf32> to vector<2x1x128xf32>
    %146 = vector.shape_cast %145 : vector<2x1x128xf32> to vector<2x128xf32>
    %147 = arith.addf %144, %146 : vector<2x128xf32>
    %148 = vector.extract_strided_slice %119 {offsets = [0, 5, 0], sizes = [2, 1, 128], strides = [1, 1, 1]} : vector<2x8x128xf32> to vector<2x1x128xf32>
    %149 = vector.shape_cast %148 : vector<2x1x128xf32> to vector<2x128xf32>
    %150 = vector.extract_strided_slice %122 {offsets = [0, 2, 0], sizes = [2, 1, 128], strides = [1, 1, 1]} : vector<2x8x128xf32> to vector<2x1x128xf32>
    %151 = vector.shape_cast %150 : vector<2x1x128xf32> to vector<2x128xf32>
    %152 = arith.addf %149, %151 : vector<2x128xf32>
    %153 = vector.extract_strided_slice %119 {offsets = [0, 6, 0], sizes = [2, 1, 128], strides = [1, 1, 1]} : vector<2x8x128xf32> to vector<2x1x128xf32>
    %154 = vector.shape_cast %153 : vector<2x1x128xf32> to vector<2x128xf32>
    %155 = vector.extract_strided_slice %122 {offsets = [0, 1, 0], sizes = [2, 1, 128], strides = [1, 1, 1]} : vector<2x8x128xf32> to vector<2x1x128xf32>
    %156 = vector.shape_cast %155 : vector<2x1x128xf32> to vector<2x128xf32>
    %157 = arith.addf %154, %156 : vector<2x128xf32>
    %158 = vector.extract_strided_slice %119 {offsets = [0, 7, 0], sizes = [2, 1, 128], strides = [1, 1, 1]} : vector<2x8x128xf32> to vector<2x1x128xf32>
    %159 = vector.shape_cast %158 : vector<2x1x128xf32> to vector<2x128xf32>
    %160 = vector.extract_strided_slice %122 {offsets = [0, 0, 0], sizes = [2, 1, 128], strides = [1, 1, 1]} : vector<2x8x128xf32> to vector<2x1x128xf32>
    %161 = vector.shape_cast %160 : vector<2x1x128xf32> to vector<2x128xf32>
    %162 = arith.addf %159, %161 : vector<2x128xf32>
    %c232 = arith.constant 232 : index
    %c0_47 = arith.constant 0 : index
    %163 = vector.load %arg1[%c232, %c0_47] : memref<456x128xf32, #tpu.memory_space<vmem>>, vector<32x128xf32>
    %cst_48 = arith.constant 0.000000e+00 : f32
    %164 = vector.broadcast %cst_48 : f32 to vector<2x32xf32>
    %cst_49 = arith.constant 0.000000e+00 : f32
    %165 = vector.broadcast %cst_49 : f32 to vector<2x32xf32>
    %cst_50 = arith.constant dense<0.000000e+00> : vector<2x128xf32>
    %166 = tpu.matmul %164, %163, %cst_50 {dimension_numbers = #tpu.dot_dimension_numbers<[1], [0], [0], [1], [0, 0, 1, 1], [], []>} : vector<2x32xf32>, vector<32x128xf32>, vector<2x128xf32> -> vector<2x128xf32>
    %167 = arith.addf %127, %166 : vector<2x128xf32>
    %168 = vector.extract_strided_slice %167 {offsets = [0, 0], sizes = [2, 96], strides = [1, 1]} : vector<2x128xf32> to vector<2x96xf32>
    %169 = arith.negf %168 : vector<2x96xf32>
    %170 = math.exp %169 : vector<2x96xf32>
    %cst_51 = arith.constant 1.000000e+00 : f32
    %171 = vector.broadcast %cst_51 : f32 to vector<2x96xf32>
    %172 = arith.addf %171, %170 : vector<2x96xf32>
    %173 = arith.divf %171, %172 : vector<2x96xf32>
    %174 = vector.extract_strided_slice %167 {offsets = [0, 96], sizes = [2, 32], strides = [1, 1]} : vector<2x128xf32> to vector<2x32xf32>
    %175 = math.tanh %174 : vector<2x32xf32>
    %176 = vector.extract_strided_slice %173 {offsets = [0, 32], sizes = [2, 32], strides = [1, 1]} : vector<2x96xf32> to vector<2x32xf32>
    %177 = arith.mulf %176, %165 : vector<2x32xf32>
    %178 = vector.extract_strided_slice %173 {offsets = [0, 0], sizes = [2, 32], strides = [1, 1]} : vector<2x96xf32> to vector<2x32xf32>
    %179 = arith.mulf %178, %175 : vector<2x32xf32>
    %180 = arith.addf %177, %179 : vector<2x32xf32>
    %181 = vector.extract_strided_slice %173 {offsets = [0, 64], sizes = [2, 32], strides = [1, 1]} : vector<2x96xf32> to vector<2x32xf32>
    %182 = math.tanh %180 : vector<2x32xf32>
    %183 = arith.mulf %181, %182 : vector<2x32xf32>
    %cst_52 = arith.constant dense<0.000000e+00> : vector<2x128xf32>
    %184 = tpu.matmul %183, %163, %cst_52 {dimension_numbers = #tpu.dot_dimension_numbers<[1], [0], [0], [1], [0, 0, 1, 1], [], []>} : vector<2x32xf32>, vector<32x128xf32>, vector<2x128xf32> -> vector<2x128xf32>
    %185 = arith.addf %132, %184 : vector<2x128xf32>
    %186 = vector.extract_strided_slice %185 {offsets = [0, 0], sizes = [2, 96], strides = [1, 1]} : vector<2x128xf32> to vector<2x96xf32>
    %187 = arith.negf %186 : vector<2x96xf32>
    %188 = math.exp %187 : vector<2x96xf32>
    %cst_53 = arith.constant 1.000000e+00 : f32
    %189 = vector.broadcast %cst_53 : f32 to vector<2x96xf32>
    %190 = arith.addf %189, %188 : vector<2x96xf32>
    %191 = arith.divf %189, %190 : vector<2x96xf32>
    %192 = vector.extract_strided_slice %185 {offsets = [0, 96], sizes = [2, 32], strides = [1, 1]} : vector<2x128xf32> to vector<2x32xf32>
    %193 = math.tanh %192 : vector<2x32xf32>
    %194 = vector.extract_strided_slice %191 {offsets = [0, 32], sizes = [2, 32], strides = [1, 1]} : vector<2x96xf32> to vector<2x32xf32>
    %195 = arith.mulf %194, %180 : vector<2x32xf32>
    %196 = vector.extract_strided_slice %191 {offsets = [0, 0], sizes = [2, 32], strides = [1, 1]} : vector<2x96xf32> to vector<2x32xf32>
    %197 = arith.mulf %196, %193 : vector<2x32xf32>
    %198 = arith.addf %195, %197 : vector<2x32xf32>
    %199 = vector.extract_strided_slice %191 {offsets = [0, 64], sizes = [2, 32], strides = [1, 1]} : vector<2x96xf32> to vector<2x32xf32>
    %200 = math.tanh %198 : vector<2x32xf32>
    %201 = arith.mulf %199, %200 : vector<2x32xf32>
    %cst_54 = arith.constant dense<0.000000e+00> : vector<2x128xf32>
    %202 = tpu.matmul %201, %163, %cst_54 {dimension_numbers = #tpu.dot_dimension_numbers<[1], [0], [0], [1], [0, 0, 1, 1], [], []>} : vector<2x32xf32>, vector<32x128xf32>, vector<2x128xf32> -> vector<2x128xf32>
    %203 = arith.addf %137, %202 : vector<2x128xf32>
    %204 = vector.extract_strided_slice %203 {offsets = [0, 0], sizes = [2, 96], strides = [1, 1]} : vector<2x128xf32> to vector<2x96xf32>
    %205 = arith.negf %204 : vector<2x96xf32>
    %206 = math.exp %205 : vector<2x96xf32>
    %cst_55 = arith.constant 1.000000e+00 : f32
    %207 = vector.broadcast %cst_55 : f32 to vector<2x96xf32>
    %208 = arith.addf %207, %206 : vector<2x96xf32>
    %209 = arith.divf %207, %208 : vector<2x96xf32>
    %210 = vector.extract_strided_slice %203 {offsets = [0, 96], sizes = [2, 32], strides = [1, 1]} : vector<2x128xf32> to vector<2x32xf32>
    %211 = math.tanh %210 : vector<2x32xf32>
    %212 = vector.extract_strided_slice %209 {offsets = [0, 32], sizes = [2, 32], strides = [1, 1]} : vector<2x96xf32> to vector<2x32xf32>
    %213 = arith.mulf %212, %198 : vector<2x32xf32>
    %214 = vector.extract_strided_slice %209 {offsets = [0, 0], sizes = [2, 32], strides = [1, 1]} : vector<2x96xf32> to vector<2x32xf32>
    %215 = arith.mulf %214, %211 : vector<2x32xf32>
    %216 = arith.addf %213, %215 : vector<2x32xf32>
    %217 = vector.extract_strided_slice %209 {offsets = [0, 64], sizes = [2, 32], strides = [1, 1]} : vector<2x96xf32> to vector<2x32xf32>
    %218 = math.tanh %216 : vector<2x32xf32>
    %219 = arith.mulf %217, %218 : vector<2x32xf32>
    %cst_56 = arith.constant dense<0.000000e+00> : vector<2x128xf32>
    %220 = tpu.matmul %219, %163, %cst_56 {dimension_numbers = #tpu.dot_dimension_numbers<[1], [0], [0], [1], [0, 0, 1, 1], [], []>} : vector<2x32xf32>, vector<32x128xf32>, vector<2x128xf32> -> vector<2x128xf32>
    %221 = arith.addf %142, %220 : vector<2x128xf32>
    %222 = vector.extract_strided_slice %221 {offsets = [0, 0], sizes = [2, 96], strides = [1, 1]} : vector<2x128xf32> to vector<2x96xf32>
    %223 = arith.negf %222 : vector<2x96xf32>
    %224 = math.exp %223 : vector<2x96xf32>
    %cst_57 = arith.constant 1.000000e+00 : f32
    %225 = vector.broadcast %cst_57 : f32 to vector<2x96xf32>
    %226 = arith.addf %225, %224 : vector<2x96xf32>
    %227 = arith.divf %225, %226 : vector<2x96xf32>
    %228 = vector.extract_strided_slice %221 {offsets = [0, 96], sizes = [2, 32], strides = [1, 1]} : vector<2x128xf32> to vector<2x32xf32>
    %229 = math.tanh %228 : vector<2x32xf32>
    %230 = vector.extract_strided_slice %227 {offsets = [0, 32], sizes = [2, 32], strides = [1, 1]} : vector<2x96xf32> to vector<2x32xf32>
    %231 = arith.mulf %230, %216 : vector<2x32xf32>
    %232 = vector.extract_strided_slice %227 {offsets = [0, 0], sizes = [2, 32], strides = [1, 1]} : vector<2x96xf32> to vector<2x32xf32>
    %233 = arith.mulf %232, %229 : vector<2x32xf32>
    %234 = arith.addf %231, %233 : vector<2x32xf32>
    %235 = vector.extract_strided_slice %227 {offsets = [0, 64], sizes = [2, 32], strides = [1, 1]} : vector<2x96xf32> to vector<2x32xf32>
    %236 = math.tanh %234 : vector<2x32xf32>
    %237 = arith.mulf %235, %236 : vector<2x32xf32>
    %cst_58 = arith.constant dense<0.000000e+00> : vector<2x128xf32>
    %238 = tpu.matmul %237, %163, %cst_58 {dimension_numbers = #tpu.dot_dimension_numbers<[1], [0], [0], [1], [0, 0, 1, 1], [], []>} : vector<2x32xf32>, vector<32x128xf32>, vector<2x128xf32> -> vector<2x128xf32>
    %239 = arith.addf %147, %238 : vector<2x128xf32>
    %240 = vector.extract_strided_slice %239 {offsets = [0, 0], sizes = [2, 96], strides = [1, 1]} : vector<2x128xf32> to vector<2x96xf32>
    %241 = arith.negf %240 : vector<2x96xf32>
    %242 = math.exp %241 : vector<2x96xf32>
    %cst_59 = arith.constant 1.000000e+00 : f32
    %243 = vector.broadcast %cst_59 : f32 to vector<2x96xf32>
    %244 = arith.addf %243, %242 : vector<2x96xf32>
    %245 = arith.divf %243, %244 : vector<2x96xf32>
    %246 = vector.extract_strided_slice %239 {offsets = [0, 96], sizes = [2, 32], strides = [1, 1]} : vector<2x128xf32> to vector<2x32xf32>
    %247 = math.tanh %246 : vector<2x32xf32>
    %248 = vector.extract_strided_slice %245 {offsets = [0, 32], sizes = [2, 32], strides = [1, 1]} : vector<2x96xf32> to vector<2x32xf32>
    %249 = arith.mulf %248, %234 : vector<2x32xf32>
    %250 = vector.extract_strided_slice %245 {offsets = [0, 0], sizes = [2, 32], strides = [1, 1]} : vector<2x96xf32> to vector<2x32xf32>
    %251 = arith.mulf %250, %247 : vector<2x32xf32>
    %252 = arith.addf %249, %251 : vector<2x32xf32>
    %253 = vector.extract_strided_slice %245 {offsets = [0, 64], sizes = [2, 32], strides = [1, 1]} : vector<2x96xf32> to vector<2x32xf32>
    %254 = math.tanh %252 : vector<2x32xf32>
    %255 = arith.mulf %253, %254 : vector<2x32xf32>
    %cst_60 = arith.constant dense<0.000000e+00> : vector<2x128xf32>
    %256 = tpu.matmul %255, %163, %cst_60 {dimension_numbers = #tpu.dot_dimension_numbers<[1], [0], [0], [1], [0, 0, 1, 1], [], []>} : vector<2x32xf32>, vector<32x128xf32>, vector<2x128xf32> -> vector<2x128xf32>
    %257 = arith.addf %152, %256 : vector<2x128xf32>
    %258 = vector.extract_strided_slice %257 {offsets = [0, 0], sizes = [2, 96], strides = [1, 1]} : vector<2x128xf32> to vector<2x96xf32>
    %259 = arith.negf %258 : vector<2x96xf32>
    %260 = math.exp %259 : vector<2x96xf32>
    %cst_61 = arith.constant 1.000000e+00 : f32
    %261 = vector.broadcast %cst_61 : f32 to vector<2x96xf32>
    %262 = arith.addf %261, %260 : vector<2x96xf32>
    %263 = arith.divf %261, %262 : vector<2x96xf32>
    %264 = vector.extract_strided_slice %257 {offsets = [0, 96], sizes = [2, 32], strides = [1, 1]} : vector<2x128xf32> to vector<2x32xf32>
    %265 = math.tanh %264 : vector<2x32xf32>
    %266 = vector.extract_strided_slice %263 {offsets = [0, 32], sizes = [2, 32], strides = [1, 1]} : vector<2x96xf32> to vector<2x32xf32>
    %267 = arith.mulf %266, %252 : vector<2x32xf32>
    %268 = vector.extract_strided_slice %263 {offsets = [0, 0], sizes = [2, 32], strides = [1, 1]} : vector<2x96xf32> to vector<2x32xf32>
    %269 = arith.mulf %268, %265 : vector<2x32xf32>
    %270 = arith.addf %267, %269 : vector<2x32xf32>
    %271 = vector.extract_strided_slice %263 {offsets = [0, 64], sizes = [2, 32], strides = [1, 1]} : vector<2x96xf32> to vector<2x32xf32>
    %272 = math.tanh %270 : vector<2x32xf32>
    %273 = arith.mulf %271, %272 : vector<2x32xf32>
    %cst_62 = arith.constant dense<0.000000e+00> : vector<2x128xf32>
    %274 = tpu.matmul %273, %163, %cst_62 {dimension_numbers = #tpu.dot_dimension_numbers<[1], [0], [0], [1], [0, 0, 1, 1], [], []>} : vector<2x32xf32>, vector<32x128xf32>, vector<2x128xf32> -> vector<2x128xf32>
    %275 = arith.addf %157, %274 : vector<2x128xf32>
    %276 = vector.extract_strided_slice %275 {offsets = [0, 0], sizes = [2, 96], strides = [1, 1]} : vector<2x128xf32> to vector<2x96xf32>
    %277 = arith.negf %276 : vector<2x96xf32>
    %278 = math.exp %277 : vector<2x96xf32>
    %cst_63 = arith.constant 1.000000e+00 : f32
    %279 = vector.broadcast %cst_63 : f32 to vector<2x96xf32>
    %280 = arith.addf %279, %278 : vector<2x96xf32>
    %281 = arith.divf %279, %280 : vector<2x96xf32>
    %282 = vector.extract_strided_slice %275 {offsets = [0, 96], sizes = [2, 32], strides = [1, 1]} : vector<2x128xf32> to vector<2x32xf32>
    %283 = math.tanh %282 : vector<2x32xf32>
    %284 = vector.extract_strided_slice %281 {offsets = [0, 32], sizes = [2, 32], strides = [1, 1]} : vector<2x96xf32> to vector<2x32xf32>
    %285 = arith.mulf %284, %270 : vector<2x32xf32>
    %286 = vector.extract_strided_slice %281 {offsets = [0, 0], sizes = [2, 32], strides = [1, 1]} : vector<2x96xf32> to vector<2x32xf32>
    %287 = arith.mulf %286, %283 : vector<2x32xf32>
    %288 = arith.addf %285, %287 : vector<2x32xf32>
    %289 = vector.extract_strided_slice %281 {offsets = [0, 64], sizes = [2, 32], strides = [1, 1]} : vector<2x96xf32> to vector<2x32xf32>
    %290 = math.tanh %288 : vector<2x32xf32>
    %291 = arith.mulf %289, %290 : vector<2x32xf32>
    %cst_64 = arith.constant dense<0.000000e+00> : vector<2x128xf32>
    %292 = tpu.matmul %291, %163, %cst_64 {dimension_numbers = #tpu.dot_dimension_numbers<[1], [0], [0], [1], [0, 0, 1, 1], [], []>} : vector<2x32xf32>, vector<32x128xf32>, vector<2x128xf32> -> vector<2x128xf32>
    %293 = arith.addf %162, %292 : vector<2x128xf32>
    %294 = vector.extract_strided_slice %293 {offsets = [0, 0], sizes = [2, 96], strides = [1, 1]} : vector<2x128xf32> to vector<2x96xf32>
    %295 = arith.negf %294 : vector<2x96xf32>
    %296 = math.exp %295 : vector<2x96xf32>
    %cst_65 = arith.constant 1.000000e+00 : f32
    %297 = vector.broadcast %cst_65 : f32 to vector<2x96xf32>
    %298 = arith.addf %297, %296 : vector<2x96xf32>
    %299 = arith.divf %297, %298 : vector<2x96xf32>
    %300 = vector.extract_strided_slice %293 {offsets = [0, 96], sizes = [2, 32], strides = [1, 1]} : vector<2x128xf32> to vector<2x32xf32>
    %301 = math.tanh %300 : vector<2x32xf32>
    %302 = vector.extract_strided_slice %299 {offsets = [0, 32], sizes = [2, 32], strides = [1, 1]} : vector<2x96xf32> to vector<2x32xf32>
    %303 = arith.mulf %302, %288 : vector<2x32xf32>
    %304 = vector.extract_strided_slice %299 {offsets = [0, 0], sizes = [2, 32], strides = [1, 1]} : vector<2x96xf32> to vector<2x32xf32>
    %305 = arith.mulf %304, %301 : vector<2x32xf32>
    %306 = arith.addf %303, %305 : vector<2x32xf32>
    %307 = vector.extract_strided_slice %299 {offsets = [0, 64], sizes = [2, 32], strides = [1, 1]} : vector<2x96xf32> to vector<2x32xf32>
    %308 = math.tanh %306 : vector<2x32xf32>
    %309 = arith.mulf %307, %308 : vector<2x32xf32>
    %310 = tpu.concatenate %183, %201, %219, %237, %255, %273, %291, %309 in 0 : vector<2x32xf32>, vector<2x32xf32>, vector<2x32xf32>, vector<2x32xf32>, vector<2x32xf32>, vector<2x32xf32>, vector<2x32xf32>, vector<2x32xf32> -> vector<16x32xf32>
    %c272 = arith.constant 272 : index
    %c0_66 = arith.constant 0 : index
    %311 = vector.load %arg1[%c272, %c0_66] : memref<456x128xf32, #tpu.memory_space<vmem>>, vector<32x128xf32>
    %312 = vector.extract_strided_slice %310 {offsets = [0, 0], sizes = [16, 16], strides = [1, 1]} : vector<16x32xf32> to vector<16x16xf32>
    %313 = vector.extract_strided_slice %311 {offsets = [0, 0], sizes = [16, 128], strides = [1, 1]} : vector<32x128xf32> to vector<16x128xf32>
    %cst_67 = arith.constant dense<0.000000e+00> : vector<16x128xf32>
    %314 = tpu.matmul %312, %313, %cst_67 {dimension_numbers = #tpu.dot_dimension_numbers<[1], [0], [0], [1], [0, 0, 1, 1], [], []>} : vector<16x16xf32>, vector<16x128xf32>, vector<16x128xf32> -> vector<16x128xf32>
    %315 = vector.extract_strided_slice %310 {offsets = [0, 16], sizes = [16, 16], strides = [1, 1]} : vector<16x32xf32> to vector<16x16xf32>
    %316 = vector.extract_strided_slice %311 {offsets = [16, 0], sizes = [16, 128], strides = [1, 1]} : vector<32x128xf32> to vector<16x128xf32>
    %cst_68 = arith.constant dense<0.000000e+00> : vector<16x128xf32>
    %317 = tpu.matmul %315, %316, %cst_68 {dimension_numbers = #tpu.dot_dimension_numbers<[1], [0], [0], [1], [0, 0, 1, 1], [], []>} : vector<16x16xf32>, vector<16x128xf32>, vector<16x128xf32> -> vector<16x128xf32>
    %318 = vector.extract_strided_slice %314 {offsets = [0, 0], sizes = [2, 128], strides = [1, 1]} : vector<16x128xf32> to vector<2x128xf32>
    %319 = vector.extract_strided_slice %317 {offsets = [14, 0], sizes = [2, 128], strides = [1, 1]} : vector<16x128xf32> to vector<2x128xf32>
    %320 = arith.addf %318, %319 : vector<2x128xf32>
    %321 = vector.extract_strided_slice %314 {offsets = [2, 0], sizes = [2, 128], strides = [1, 1]} : vector<16x128xf32> to vector<2x128xf32>
    %322 = vector.extract_strided_slice %317 {offsets = [12, 0], sizes = [2, 128], strides = [1, 1]} : vector<16x128xf32> to vector<2x128xf32>
    %323 = arith.addf %321, %322 : vector<2x128xf32>
    %324 = vector.extract_strided_slice %314 {offsets = [4, 0], sizes = [2, 128], strides = [1, 1]} : vector<16x128xf32> to vector<2x128xf32>
    %325 = vector.extract_strided_slice %317 {offsets = [10, 0], sizes = [2, 128], strides = [1, 1]} : vector<16x128xf32> to vector<2x128xf32>
    %326 = arith.addf %324, %325 : vector<2x128xf32>
    %327 = vector.extract_strided_slice %314 {offsets = [6, 0], sizes = [2, 128], strides = [1, 1]} : vector<16x128xf32> to vector<2x128xf32>
    %328 = vector.extract_strided_slice %317 {offsets = [8, 0], sizes = [2, 128], strides = [1, 1]} : vector<16x128xf32> to vector<2x128xf32>
    %329 = arith.addf %327, %328 : vector<2x128xf32>
    %330 = vector.extract_strided_slice %314 {offsets = [8, 0], sizes = [2, 128], strides = [1, 1]} : vector<16x128xf32> to vector<2x128xf32>
    %331 = vector.extract_strided_slice %317 {offsets = [6, 0], sizes = [2, 128], strides = [1, 1]} : vector<16x128xf32> to vector<2x128xf32>
    %332 = arith.addf %330, %331 : vector<2x128xf32>
    %333 = vector.extract_strided_slice %314 {offsets = [10, 0], sizes = [2, 128], strides = [1, 1]} : vector<16x128xf32> to vector<2x128xf32>
    %334 = vector.extract_strided_slice %317 {offsets = [4, 0], sizes = [2, 128], strides = [1, 1]} : vector<16x128xf32> to vector<2x128xf32>
    %335 = arith.addf %333, %334 : vector<2x128xf32>
    %336 = vector.extract_strided_slice %314 {offsets = [12, 0], sizes = [2, 128], strides = [1, 1]} : vector<16x128xf32> to vector<2x128xf32>
    %337 = vector.extract_strided_slice %317 {offsets = [2, 0], sizes = [2, 128], strides = [1, 1]} : vector<16x128xf32> to vector<2x128xf32>
    %338 = arith.addf %336, %337 : vector<2x128xf32>
    %339 = vector.extract_strided_slice %314 {offsets = [14, 0], sizes = [2, 128], strides = [1, 1]} : vector<16x128xf32> to vector<2x128xf32>
    %340 = vector.extract_strided_slice %317 {offsets = [0, 0], sizes = [2, 128], strides = [1, 1]} : vector<16x128xf32> to vector<2x128xf32>
    %341 = arith.addf %339, %340 : vector<2x128xf32>
    %c304 = arith.constant 304 : index
    %c0_69 = arith.constant 0 : index
    %342 = vector.load %arg1[%c304, %c0_69] : memref<456x128xf32, #tpu.memory_space<vmem>>, vector<16x64xf32>
    %c320 = arith.constant 320 : index
    %c0_70 = arith.constant 0 : index
    %343 = vector.load %arg1[%c320, %c0_70] : memref<456x128xf32, #tpu.memory_space<vmem>>, vector<1x64xf32>
    %cst_71 = arith.constant 0.000000e+00 : f32
    %344 = vector.broadcast %cst_71 : f32 to vector<2x16xf32>
    %cst_72 = arith.constant 0.000000e+00 : f32
    %345 = vector.broadcast %cst_72 : f32 to vector<2x16xf32>
    %346 = vector.extract_strided_slice %320 {offsets = [0, 0], sizes = [2, 64], strides = [1, 1]} : vector<2x128xf32> to vector<2x64xf32>
    %347 = vector.broadcast %343 : vector<1x64xf32> to vector<2x64xf32>
    %348 = arith.addf %346, %347 : vector<2x64xf32>
    %cst_73 = arith.constant dense<0.000000e+00> : vector<2x64xf32>
    %349 = tpu.matmul %344, %342, %cst_73 {dimension_numbers = #tpu.dot_dimension_numbers<[1], [0], [0], [1], [0, 0, 1, 1], [], []>} : vector<2x16xf32>, vector<16x64xf32>, vector<2x64xf32> -> vector<2x64xf32>
    %350 = arith.addf %348, %349 : vector<2x64xf32>
    %351 = vector.extract_strided_slice %350 {offsets = [0, 0], sizes = [2, 48], strides = [1, 1]} : vector<2x64xf32> to vector<2x48xf32>
    %352 = arith.negf %351 : vector<2x48xf32>
    %353 = math.exp %352 : vector<2x48xf32>
    %cst_74 = arith.constant 1.000000e+00 : f32
    %354 = vector.broadcast %cst_74 : f32 to vector<2x48xf32>
    %355 = arith.addf %354, %353 : vector<2x48xf32>
    %356 = arith.divf %354, %355 : vector<2x48xf32>
    %357 = vector.extract_strided_slice %350 {offsets = [0, 48], sizes = [2, 16], strides = [1, 1]} : vector<2x64xf32> to vector<2x16xf32>
    %358 = math.tanh %357 : vector<2x16xf32>
    %359 = vector.extract_strided_slice %356 {offsets = [0, 16], sizes = [2, 16], strides = [1, 1]} : vector<2x48xf32> to vector<2x16xf32>
    %360 = arith.mulf %359, %345 : vector<2x16xf32>
    %361 = vector.extract_strided_slice %356 {offsets = [0, 0], sizes = [2, 16], strides = [1, 1]} : vector<2x48xf32> to vector<2x16xf32>
    %362 = arith.mulf %361, %358 : vector<2x16xf32>
    %363 = arith.addf %360, %362 : vector<2x16xf32>
    %364 = vector.extract_strided_slice %356 {offsets = [0, 32], sizes = [2, 16], strides = [1, 1]} : vector<2x48xf32> to vector<2x16xf32>
    %365 = math.tanh %363 : vector<2x16xf32>
    %366 = arith.mulf %364, %365 : vector<2x16xf32>
    %367 = vector.extract_strided_slice %323 {offsets = [0, 0], sizes = [2, 64], strides = [1, 1]} : vector<2x128xf32> to vector<2x64xf32>
    %368 = vector.broadcast %343 : vector<1x64xf32> to vector<2x64xf32>
    %369 = arith.addf %367, %368 : vector<2x64xf32>
    %cst_75 = arith.constant dense<0.000000e+00> : vector<2x64xf32>
    %370 = tpu.matmul %366, %342, %cst_75 {dimension_numbers = #tpu.dot_dimension_numbers<[1], [0], [0], [1], [0, 0, 1, 1], [], []>} : vector<2x16xf32>, vector<16x64xf32>, vector<2x64xf32> -> vector<2x64xf32>
    %371 = arith.addf %369, %370 : vector<2x64xf32>
    %372 = vector.extract_strided_slice %371 {offsets = [0, 0], sizes = [2, 48], strides = [1, 1]} : vector<2x64xf32> to vector<2x48xf32>
    %373 = arith.negf %372 : vector<2x48xf32>
    %374 = math.exp %373 : vector<2x48xf32>
    %cst_76 = arith.constant 1.000000e+00 : f32
    %375 = vector.broadcast %cst_76 : f32 to vector<2x48xf32>
    %376 = arith.addf %375, %374 : vector<2x48xf32>
    %377 = arith.divf %375, %376 : vector<2x48xf32>
    %378 = vector.extract_strided_slice %371 {offsets = [0, 48], sizes = [2, 16], strides = [1, 1]} : vector<2x64xf32> to vector<2x16xf32>
    %379 = math.tanh %378 : vector<2x16xf32>
    %380 = vector.extract_strided_slice %377 {offsets = [0, 16], sizes = [2, 16], strides = [1, 1]} : vector<2x48xf32> to vector<2x16xf32>
    %381 = arith.mulf %380, %363 : vector<2x16xf32>
    %382 = vector.extract_strided_slice %377 {offsets = [0, 0], sizes = [2, 16], strides = [1, 1]} : vector<2x48xf32> to vector<2x16xf32>
    %383 = arith.mulf %382, %379 : vector<2x16xf32>
    %384 = arith.addf %381, %383 : vector<2x16xf32>
    %385 = vector.extract_strided_slice %377 {offsets = [0, 32], sizes = [2, 16], strides = [1, 1]} : vector<2x48xf32> to vector<2x16xf32>
    %386 = math.tanh %384 : vector<2x16xf32>
    %387 = arith.mulf %385, %386 : vector<2x16xf32>
    %388 = vector.extract_strided_slice %326 {offsets = [0, 0], sizes = [2, 64], strides = [1, 1]} : vector<2x128xf32> to vector<2x64xf32>
    %389 = vector.broadcast %343 : vector<1x64xf32> to vector<2x64xf32>
    %390 = arith.addf %388, %389 : vector<2x64xf32>
    %cst_77 = arith.constant dense<0.000000e+00> : vector<2x64xf32>
    %391 = tpu.matmul %387, %342, %cst_77 {dimension_numbers = #tpu.dot_dimension_numbers<[1], [0], [0], [1], [0, 0, 1, 1], [], []>} : vector<2x16xf32>, vector<16x64xf32>, vector<2x64xf32> -> vector<2x64xf32>
    %392 = arith.addf %390, %391 : vector<2x64xf32>
    %393 = vector.extract_strided_slice %392 {offsets = [0, 0], sizes = [2, 48], strides = [1, 1]} : vector<2x64xf32> to vector<2x48xf32>
    %394 = arith.negf %393 : vector<2x48xf32>
    %395 = math.exp %394 : vector<2x48xf32>
    %cst_78 = arith.constant 1.000000e+00 : f32
    %396 = vector.broadcast %cst_78 : f32 to vector<2x48xf32>
    %397 = arith.addf %396, %395 : vector<2x48xf32>
    %398 = arith.divf %396, %397 : vector<2x48xf32>
    %399 = vector.extract_strided_slice %392 {offsets = [0, 48], sizes = [2, 16], strides = [1, 1]} : vector<2x64xf32> to vector<2x16xf32>
    %400 = math.tanh %399 : vector<2x16xf32>
    %401 = vector.extract_strided_slice %398 {offsets = [0, 16], sizes = [2, 16], strides = [1, 1]} : vector<2x48xf32> to vector<2x16xf32>
    %402 = arith.mulf %401, %384 : vector<2x16xf32>
    %403 = vector.extract_strided_slice %398 {offsets = [0, 0], sizes = [2, 16], strides = [1, 1]} : vector<2x48xf32> to vector<2x16xf32>
    %404 = arith.mulf %403, %400 : vector<2x16xf32>
    %405 = arith.addf %402, %404 : vector<2x16xf32>
    %406 = vector.extract_strided_slice %398 {offsets = [0, 32], sizes = [2, 16], strides = [1, 1]} : vector<2x48xf32> to vector<2x16xf32>
    %407 = math.tanh %405 : vector<2x16xf32>
    %408 = arith.mulf %406, %407 : vector<2x16xf32>
    %409 = vector.extract_strided_slice %329 {offsets = [0, 0], sizes = [2, 64], strides = [1, 1]} : vector<2x128xf32> to vector<2x64xf32>
    %410 = vector.broadcast %343 : vector<1x64xf32> to vector<2x64xf32>
    %411 = arith.addf %409, %410 : vector<2x64xf32>
    %cst_79 = arith.constant dense<0.000000e+00> : vector<2x64xf32>
    %412 = tpu.matmul %408, %342, %cst_79 {dimension_numbers = #tpu.dot_dimension_numbers<[1], [0], [0], [1], [0, 0, 1, 1], [], []>} : vector<2x16xf32>, vector<16x64xf32>, vector<2x64xf32> -> vector<2x64xf32>
    %413 = arith.addf %411, %412 : vector<2x64xf32>
    %414 = vector.extract_strided_slice %413 {offsets = [0, 0], sizes = [2, 48], strides = [1, 1]} : vector<2x64xf32> to vector<2x48xf32>
    %415 = arith.negf %414 : vector<2x48xf32>
    %416 = math.exp %415 : vector<2x48xf32>
    %cst_80 = arith.constant 1.000000e+00 : f32
    %417 = vector.broadcast %cst_80 : f32 to vector<2x48xf32>
    %418 = arith.addf %417, %416 : vector<2x48xf32>
    %419 = arith.divf %417, %418 : vector<2x48xf32>
    %420 = vector.extract_strided_slice %413 {offsets = [0, 48], sizes = [2, 16], strides = [1, 1]} : vector<2x64xf32> to vector<2x16xf32>
    %421 = math.tanh %420 : vector<2x16xf32>
    %422 = vector.extract_strided_slice %419 {offsets = [0, 16], sizes = [2, 16], strides = [1, 1]} : vector<2x48xf32> to vector<2x16xf32>
    %423 = arith.mulf %422, %405 : vector<2x16xf32>
    %424 = vector.extract_strided_slice %419 {offsets = [0, 0], sizes = [2, 16], strides = [1, 1]} : vector<2x48xf32> to vector<2x16xf32>
    %425 = arith.mulf %424, %421 : vector<2x16xf32>
    %426 = arith.addf %423, %425 : vector<2x16xf32>
    %427 = vector.extract_strided_slice %419 {offsets = [0, 32], sizes = [2, 16], strides = [1, 1]} : vector<2x48xf32> to vector<2x16xf32>
    %428 = math.tanh %426 : vector<2x16xf32>
    %429 = arith.mulf %427, %428 : vector<2x16xf32>
    %430 = vector.extract_strided_slice %332 {offsets = [0, 0], sizes = [2, 64], strides = [1, 1]} : vector<2x128xf32> to vector<2x64xf32>
    %431 = vector.broadcast %343 : vector<1x64xf32> to vector<2x64xf32>
    %432 = arith.addf %430, %431 : vector<2x64xf32>
    %cst_81 = arith.constant dense<0.000000e+00> : vector<2x64xf32>
    %433 = tpu.matmul %429, %342, %cst_81 {dimension_numbers = #tpu.dot_dimension_numbers<[1], [0], [0], [1], [0, 0, 1, 1], [], []>} : vector<2x16xf32>, vector<16x64xf32>, vector<2x64xf32> -> vector<2x64xf32>
    %434 = arith.addf %432, %433 : vector<2x64xf32>
    %435 = vector.extract_strided_slice %434 {offsets = [0, 0], sizes = [2, 48], strides = [1, 1]} : vector<2x64xf32> to vector<2x48xf32>
    %436 = arith.negf %435 : vector<2x48xf32>
    %437 = math.exp %436 : vector<2x48xf32>
    %cst_82 = arith.constant 1.000000e+00 : f32
    %438 = vector.broadcast %cst_82 : f32 to vector<2x48xf32>
    %439 = arith.addf %438, %437 : vector<2x48xf32>
    %440 = arith.divf %438, %439 : vector<2x48xf32>
    %441 = vector.extract_strided_slice %434 {offsets = [0, 48], sizes = [2, 16], strides = [1, 1]} : vector<2x64xf32> to vector<2x16xf32>
    %442 = math.tanh %441 : vector<2x16xf32>
    %443 = vector.extract_strided_slice %440 {offsets = [0, 16], sizes = [2, 16], strides = [1, 1]} : vector<2x48xf32> to vector<2x16xf32>
    %444 = arith.mulf %443, %426 : vector<2x16xf32>
    %445 = vector.extract_strided_slice %440 {offsets = [0, 0], sizes = [2, 16], strides = [1, 1]} : vector<2x48xf32> to vector<2x16xf32>
    %446 = arith.mulf %445, %442 : vector<2x16xf32>
    %447 = arith.addf %444, %446 : vector<2x16xf32>
    %448 = vector.extract_strided_slice %440 {offsets = [0, 32], sizes = [2, 16], strides = [1, 1]} : vector<2x48xf32> to vector<2x16xf32>
    %449 = math.tanh %447 : vector<2x16xf32>
    %450 = arith.mulf %448, %449 : vector<2x16xf32>
    %451 = vector.extract_strided_slice %335 {offsets = [0, 0], sizes = [2, 64], strides = [1, 1]} : vector<2x128xf32> to vector<2x64xf32>
    %452 = vector.broadcast %343 : vector<1x64xf32> to vector<2x64xf32>
    %453 = arith.addf %451, %452 : vector<2x64xf32>
    %cst_83 = arith.constant dense<0.000000e+00> : vector<2x64xf32>
    %454 = tpu.matmul %450, %342, %cst_83 {dimension_numbers = #tpu.dot_dimension_numbers<[1], [0], [0], [1], [0, 0, 1, 1], [], []>} : vector<2x16xf32>, vector<16x64xf32>, vector<2x64xf32> -> vector<2x64xf32>
    %455 = arith.addf %453, %454 : vector<2x64xf32>
    %456 = vector.extract_strided_slice %455 {offsets = [0, 0], sizes = [2, 48], strides = [1, 1]} : vector<2x64xf32> to vector<2x48xf32>
    %457 = arith.negf %456 : vector<2x48xf32>
    %458 = math.exp %457 : vector<2x48xf32>
    %cst_84 = arith.constant 1.000000e+00 : f32
    %459 = vector.broadcast %cst_84 : f32 to vector<2x48xf32>
    %460 = arith.addf %459, %458 : vector<2x48xf32>
    %461 = arith.divf %459, %460 : vector<2x48xf32>
    %462 = vector.extract_strided_slice %455 {offsets = [0, 48], sizes = [2, 16], strides = [1, 1]} : vector<2x64xf32> to vector<2x16xf32>
    %463 = math.tanh %462 : vector<2x16xf32>
    %464 = vector.extract_strided_slice %461 {offsets = [0, 16], sizes = [2, 16], strides = [1, 1]} : vector<2x48xf32> to vector<2x16xf32>
    %465 = arith.mulf %464, %447 : vector<2x16xf32>
    %466 = vector.extract_strided_slice %461 {offsets = [0, 0], sizes = [2, 16], strides = [1, 1]} : vector<2x48xf32> to vector<2x16xf32>
    %467 = arith.mulf %466, %463 : vector<2x16xf32>
    %468 = arith.addf %465, %467 : vector<2x16xf32>
    %469 = vector.extract_strided_slice %461 {offsets = [0, 32], sizes = [2, 16], strides = [1, 1]} : vector<2x48xf32> to vector<2x16xf32>
    %470 = math.tanh %468 : vector<2x16xf32>
    %471 = arith.mulf %469, %470 : vector<2x16xf32>
    %472 = vector.extract_strided_slice %338 {offsets = [0, 0], sizes = [2, 64], strides = [1, 1]} : vector<2x128xf32> to vector<2x64xf32>
    %473 = vector.broadcast %343 : vector<1x64xf32> to vector<2x64xf32>
    %474 = arith.addf %472, %473 : vector<2x64xf32>
    %cst_85 = arith.constant dense<0.000000e+00> : vector<2x64xf32>
    %475 = tpu.matmul %471, %342, %cst_85 {dimension_numbers = #tpu.dot_dimension_numbers<[1], [0], [0], [1], [0, 0, 1, 1], [], []>} : vector<2x16xf32>, vector<16x64xf32>, vector<2x64xf32> -> vector<2x64xf32>
    %476 = arith.addf %474, %475 : vector<2x64xf32>
    %477 = vector.extract_strided_slice %476 {offsets = [0, 0], sizes = [2, 48], strides = [1, 1]} : vector<2x64xf32> to vector<2x48xf32>
    %478 = arith.negf %477 : vector<2x48xf32>
    %479 = math.exp %478 : vector<2x48xf32>
    %cst_86 = arith.constant 1.000000e+00 : f32
    %480 = vector.broadcast %cst_86 : f32 to vector<2x48xf32>
    %481 = arith.addf %480, %479 : vector<2x48xf32>
    %482 = arith.divf %480, %481 : vector<2x48xf32>
    %483 = vector.extract_strided_slice %476 {offsets = [0, 48], sizes = [2, 16], strides = [1, 1]} : vector<2x64xf32> to vector<2x16xf32>
    %484 = math.tanh %483 : vector<2x16xf32>
    %485 = vector.extract_strided_slice %482 {offsets = [0, 16], sizes = [2, 16], strides = [1, 1]} : vector<2x48xf32> to vector<2x16xf32>
    %486 = arith.mulf %485, %468 : vector<2x16xf32>
    %487 = vector.extract_strided_slice %482 {offsets = [0, 0], sizes = [2, 16], strides = [1, 1]} : vector<2x48xf32> to vector<2x16xf32>
    %488 = arith.mulf %487, %484 : vector<2x16xf32>
    %489 = arith.addf %486, %488 : vector<2x16xf32>
    %490 = vector.extract_strided_slice %482 {offsets = [0, 32], sizes = [2, 16], strides = [1, 1]} : vector<2x48xf32> to vector<2x16xf32>
    %491 = math.tanh %489 : vector<2x16xf32>
    %492 = arith.mulf %490, %491 : vector<2x16xf32>
    %493 = vector.extract_strided_slice %341 {offsets = [0, 0], sizes = [2, 64], strides = [1, 1]} : vector<2x128xf32> to vector<2x64xf32>
    %494 = vector.broadcast %343 : vector<1x64xf32> to vector<2x64xf32>
    %495 = arith.addf %493, %494 : vector<2x64xf32>
    %cst_87 = arith.constant dense<0.000000e+00> : vector<2x64xf32>
    %496 = tpu.matmul %492, %342, %cst_87 {dimension_numbers = #tpu.dot_dimension_numbers<[1], [0], [0], [1], [0, 0, 1, 1], [], []>} : vector<2x16xf32>, vector<16x64xf32>, vector<2x64xf32> -> vector<2x64xf32>
    %497 = arith.addf %495, %496 : vector<2x64xf32>
    %498 = vector.extract_strided_slice %497 {offsets = [0, 0], sizes = [2, 48], strides = [1, 1]} : vector<2x64xf32> to vector<2x48xf32>
    %499 = arith.negf %498 : vector<2x48xf32>
    %500 = math.exp %499 : vector<2x48xf32>
    %cst_88 = arith.constant 1.000000e+00 : f32
    %501 = vector.broadcast %cst_88 : f32 to vector<2x48xf32>
    %502 = arith.addf %501, %500 : vector<2x48xf32>
    %503 = arith.divf %501, %502 : vector<2x48xf32>
    %504 = vector.extract_strided_slice %497 {offsets = [0, 48], sizes = [2, 16], strides = [1, 1]} : vector<2x64xf32> to vector<2x16xf32>
    %505 = math.tanh %504 : vector<2x16xf32>
    %506 = vector.extract_strided_slice %503 {offsets = [0, 16], sizes = [2, 16], strides = [1, 1]} : vector<2x48xf32> to vector<2x16xf32>
    %507 = arith.mulf %506, %489 : vector<2x16xf32>
    %508 = vector.extract_strided_slice %503 {offsets = [0, 0], sizes = [2, 16], strides = [1, 1]} : vector<2x48xf32> to vector<2x16xf32>
    %509 = arith.mulf %508, %505 : vector<2x16xf32>
    %510 = arith.addf %507, %509 : vector<2x16xf32>
    %511 = vector.extract_strided_slice %503 {offsets = [0, 32], sizes = [2, 16], strides = [1, 1]} : vector<2x48xf32> to vector<2x16xf32>
    %512 = math.tanh %510 : vector<2x16xf32>
    %513 = arith.mulf %511, %512 : vector<2x16xf32>
    %514 = vector.extract_strided_slice %341 {offsets = [0, 64], sizes = [2, 64], strides = [1, 1]} : vector<2x128xf32> to vector<2x64xf32>
    %c328 = arith.constant 328 : index
    %c0_89 = arith.constant 0 : index
    %515 = vector.load %arg1[%c328, %c0_89] : memref<456x128xf32, #tpu.memory_space<vmem>>, vector<1x64xf32>
    %516 = vector.broadcast %515 : vector<1x64xf32> to vector<2x64xf32>
    %517 = arith.addf %514, %516 : vector<2x64xf32>
    %518 = vector.extract_strided_slice %517 {offsets = [0, 0], sizes = [2, 48], strides = [1, 1]} : vector<2x64xf32> to vector<2x48xf32>
    %519 = arith.negf %518 : vector<2x48xf32>
    %520 = math.exp %519 : vector<2x48xf32>
    %cst_90 = arith.constant 1.000000e+00 : f32
    %521 = vector.broadcast %cst_90 : f32 to vector<2x48xf32>
    %522 = arith.addf %521, %520 : vector<2x48xf32>
    %523 = arith.divf %521, %522 : vector<2x48xf32>
    %524 = vector.extract_strided_slice %517 {offsets = [0, 48], sizes = [2, 16], strides = [1, 1]} : vector<2x64xf32> to vector<2x16xf32>
    %525 = math.tanh %524 : vector<2x16xf32>
    %526 = vector.extract_strided_slice %523 {offsets = [0, 32], sizes = [2, 16], strides = [1, 1]} : vector<2x48xf32> to vector<2x16xf32>
    %527 = vector.extract_strided_slice %523 {offsets = [0, 0], sizes = [2, 16], strides = [1, 1]} : vector<2x48xf32> to vector<2x16xf32>
    %528 = arith.mulf %527, %525 : vector<2x16xf32>
    %529 = math.tanh %528 : vector<2x16xf32>
    %530 = arith.mulf %526, %529 : vector<2x16xf32>
    %531 = tpu.concatenate %513, %530, %110, %111 in 1 : vector<2x16xf32>, vector<2x16xf32>, vector<2x32xf32>, vector<2x4xf32> -> vector<2x68xf32>
    %c336 = arith.constant 336 : index
    %c0_91 = arith.constant 0 : index
    %532 = vector.load %arg1[%c336, %c0_91] : memref<456x128xf32, #tpu.memory_space<vmem>>, vector<68x32xf32>
    %cst_92 = arith.constant dense<0.000000e+00> : vector<2x32xf32>
    %533 = tpu.matmul %531, %532, %cst_92 {dimension_numbers = #tpu.dot_dimension_numbers<[1], [0], [0], [1], [0, 0, 1, 1], [], []>} : vector<2x68xf32>, vector<68x32xf32>, vector<2x32xf32> -> vector<2x32xf32>
    %c408 = arith.constant 408 : index
    %c0_93 = arith.constant 0 : index
    %534 = vector.load %arg1[%c408, %c0_93] : memref<456x128xf32, #tpu.memory_space<vmem>>, vector<1x32xf32>
    %535 = vector.broadcast %534 : vector<1x32xf32> to vector<2x32xf32>
    %536 = arith.addf %533, %535 : vector<2x32xf32>
    %cst_94 = arith.constant 5.000000e-01 : f32
    %537 = vector.broadcast %cst_94 : f32 to vector<2x32xf32>
    %538 = arith.mulf %537, %536 : vector<2x32xf32>
    %cst_95 = arith.constant 0.707106769 : f32
    %539 = vector.broadcast %cst_95 : f32 to vector<2x32xf32>
    %540 = arith.mulf %536, %539 : vector<2x32xf32>
    %cst_96 = arith.constant 0.000000e+00 : f32
    %541 = vector.broadcast %cst_96 : f32 to vector<2x32xf32>
    %542 = arith.cmpf oge, %540, %541 : vector<2x32xf32>
    %cst_97 = arith.constant 1.000000e+00 : f32
    %cst_98 = arith.constant -1.000000e+00 : f32
    %543 = vector.broadcast %cst_97 : f32 to vector<2x32xf32>
    %544 = vector.broadcast %cst_98 : f32 to vector<2x32xf32>
    %545 = arith.select %542, %543, %544 : vector<2x32xi1>, vector<2x32xf32>
    %546 = math.absf %540 : vector<2x32xf32>
    %cst_99 = arith.constant 0.327591091 : f32
    %547 = vector.broadcast %cst_99 : f32 to vector<2x32xf32>
    %548 = arith.mulf %547, %546 : vector<2x32xf32>
    %cst_100 = arith.constant 1.000000e+00 : f32
    %549 = vector.broadcast %cst_100 : f32 to vector<2x32xf32>
    %550 = arith.addf %549, %548 : vector<2x32xf32>
    %551 = tpu.reciprocal %550 {approx = true} : vector<2x32xf32> -> vector<2x32xf32>
    %cst_101 = arith.constant 1.06140542 : f32
    %552 = vector.broadcast %cst_101 : f32 to vector<2x32xf32>
    %553 = arith.mulf %552, %551 : vector<2x32xf32>
    %cst_102 = arith.constant -1.45315206 : f32
    %554 = vector.broadcast %cst_102 : f32 to vector<2x32xf32>
    %555 = arith.addf %553, %554 : vector<2x32xf32>
    %556 = arith.mulf %555, %551 : vector<2x32xf32>
    %cst_103 = arith.constant 1.42141378 : f32
    %557 = vector.broadcast %cst_103 : f32 to vector<2x32xf32>
    %558 = arith.addf %556, %557 : vector<2x32xf32>
    %559 = arith.mulf %558, %551 : vector<2x32xf32>
    %cst_104 = arith.constant -0.284496725 : f32
    %560 = vector.broadcast %cst_104 : f32 to vector<2x32xf32>
    %561 = arith.addf %559, %560 : vector<2x32xf32>
    %562 = arith.mulf %561, %551 : vector<2x32xf32>
    %cst_105 = arith.constant 0.254829586 : f32
    %563 = vector.broadcast %cst_105 : f32 to vector<2x32xf32>
    %564 = arith.addf %562, %563 : vector<2x32xf32>
    %565 = arith.mulf %564, %551 : vector<2x32xf32>
    %cst_106 = arith.constant 0.000000e+00 : f32
    %566 = vector.broadcast %cst_106 : f32 to vector<2x32xf32>
    %567 = arith.subf %566, %546 : vector<2x32xf32>
    %568 = arith.mulf %567, %546 : vector<2x32xf32>
    %569 = math.exp %568 : vector<2x32xf32>
    %570 = arith.mulf %565, %569 : vector<2x32xf32>
    %cst_107 = arith.constant 1.000000e+00 : f32
    %571 = vector.broadcast %cst_107 : f32 to vector<2x32xf32>
    %572 = arith.subf %571, %570 : vector<2x32xf32>
    %573 = arith.mulf %545, %572 : vector<2x32xf32>
    %cst_108 = arith.constant 1.000000e+00 : f32
    %574 = vector.broadcast %cst_108 : f32 to vector<2x32xf32>
    %575 = arith.addf %574, %573 : vector<2x32xf32>
    %576 = arith.mulf %538, %575 : vector<2x32xf32>
    %c416 = arith.constant 416 : index
    %c0_109 = arith.constant 0 : index
    %577 = vector.load %arg1[%c416, %c0_109] : memref<456x128xf32, #tpu.memory_space<vmem>>, vector<32x128xf32>
    %c448 = arith.constant 448 : index
    %c0_110 = arith.constant 0 : index
    %578 = vector.load %arg1[%c448, %c0_110] : memref<456x128xf32, #tpu.memory_space<vmem>>, vector<1x128xf32>
    %cst_111 = arith.constant dense<0.000000e+00> : vector<2x128xf32>
    %579 = tpu.matmul %576, %577, %cst_111 {dimension_numbers = #tpu.dot_dimension_numbers<[1], [0], [0], [1], [0, 0, 1, 1], [], []>} : vector<2x32xf32>, vector<32x128xf32>, vector<2x128xf32> -> vector<2x128xf32>
    %580 = vector.broadcast %578 : vector<1x128xf32> to vector<2x128xf32>
    %581 = arith.addf %579, %580 : vector<2x128xf32>
    %cst_112 = arith.constant 0.000000e+00 : f32
    %582 = vector.broadcast %cst_112 : f32 to vector<2x128xf32>
    %583 = arith.maximumf %581, %582 : vector<2x128xf32>
    %c0_113 = arith.constant 0 : index
    %c0_114 = arith.constant 0 : index
    %584 = vector.load %arg2[%c0_113, %c0_114] : memref<2x128xf32, #tpu.memory_space<vmem>>, vector<2x128xf32>
    tpu.vector_store %arg2[%c0_113, %c0_114], %583 {strides = array<i32>} : memref<2x128xf32, #tpu.memory_space<vmem>>, vector<2x128xf32>,
    return
  }
}

</mosaic_0001>

<llo_original>
// kernel: forward.1
$region0: #{forward.1}
  #allocation0 [shape = 'u32[]', space=smem, size = 0x4, offset = 0x4, fixed_abs, tag = 'smem constant byte address 0x4 - core index']
  #allocation1 [shape = 'u32[72,128]{1,0:T(1,128)}', space=vmem, size = 0x9000, scoped, tag = 'internal scratch']
  %s0 = inlined_call_operand.hbm [shape: f32[2,8,28], index: 0, kind: input, shape index: {}]
  %s1 = inlined_call_operand.hbm [shape: f32[456,128], index: 1, kind: input, shape index: {}]
  %s2 = inlined_call_operand.hbm [shape: f32[2,128], index: 2, kind: output, shape index: {}]
  %s3 = sld [smem:[#allocation0]]
  $region26: #{forward.1} parent=0
    _
  %s5 = ssub.s32 1, %s3
  %s6 = scalar_select 0, %s5, %s3
  $region1: #{forward.1} parent=0
    #allocation2 [shape = 'u8[8192]{0}', space=vmem, size = 0x2000, scoped, tag = 'input window, operand 0, single buffered']
    #allocation3 [shape = 's32[1]{0}', space=sflag, size = 0x4, scoped, tag = 'scoped memory for forward.1']
    #allocation4 [shape = 's32[1]{0}', space=sflag, size = 0x4, scoped, tag = 'scoped memory for forward.1']
    #allocation5 [shape = 'u8[233472]{0}', space=vmem, size = 0x39000, scoped, tag = 'input window, operand 1, single buffered']
    #allocation6 [shape = 's32[1]{0}', space=sflag, size = 0x4, scoped, tag = 'scoped memory for forward.1']
    #allocation7 [shape = 'u8[1024]{0}', space=vmem, size = 0x400, scoped, tag = 'output window, operand 0, single buffered']
    %7 = vsyncpa [#allocation3], 0
    %8 = vsyncpa [#allocation6], 0
    %9 = vsyncpa [#allocation4], 0
    // Predicated region
    $region2: #{forward.1} parent=1 // pred_check
      _
    $region3: #{forward.1} parent=1 // pred_check_branch
      %11 = sbr.rel (0) target = $region5
    $region4: #{forward.1} parent=1 // pred_region
      %13 = vsyncadd [#allocation3], 0
      %s14 = sshll.u32 %s0, 4
      %s15 = int_to_ptr.hbm [resolvable:$true] %s14
      %s16 = sshll.u32 [#allocation2], 4
      %s17 = int_to_ptr.vmem [resolvable:$true] %s16
      %22 = dma.hbm_to_vmem [thread:$0]  %s15, 256, %s17, [#allocation3], 128, 128, 8
    $region5: #{forward.1} parent=1 // pred_fallthru
      _
    // Predicated region
    $region6: #{forward.1} parent=1 // pred_check
      _
    $region7: #{forward.1} parent=1 // pred_check_branch
      %24 = sbr.rel (0) target = $region9
    $region8: #{forward.1} parent=1 // pred_region
      %26 = vsyncadd [#allocation6], 0
      %s27 = sshll.u32 %s1, 4
      %s28 = int_to_ptr.hbm [resolvable:$true] %s27
      %s29 = sshll.u32 [#allocation5], 4
      %s30 = int_to_ptr.vmem [resolvable:$true] %s29
      %35 = dma.hbm_to_vmem [thread:$0]  %s28, 7296, %s30, [#allocation6], 128, 128, 8
    $region9: #{forward.1} parent=1 // pred_fallthru
      _
    // Predicated region
    $region10: #{forward.1} parent=1 // pred_check
      _
    $region11: #{forward.1} parent=1 // pred_check_branch
      %37 = sbr.rel (0) target = $region13
    $region12: #{forward.1} parent=1 // pred_region
      %39 = dma.done [#allocation3], 256
    $region13: #{forward.1} parent=1 // pred_fallthru
      _
    // Predicated region
    $region14: #{forward.1} parent=1 // pred_check
      _
    $region15: #{forward.1} parent=1 // pred_check_branch
      %41 = sbr.rel (0) target = $region17
    $region16: #{forward.1} parent=1 // pred_region
      %43 = dma.done [#allocation6], 7296
    $region17: #{forward.1} parent=1 // pred_fallthru
      _
    %v44 = vld [vmem:[#allocation2] sm:$0xff]
    %v45 = vld [vmem:[#allocation2 + $0x8] sm:$0xff]
    %v46 = vld [vmem:[#allocation5] sm:$0xff]
    %v47 = vld [vmem:[#allocation5 + $0x8] sm:$0xff]
    %v48 = vld [vmem:[#allocation5 + $0x10] sm:$0xff]
    %v49 = vld [vmem:[#allocation5 + $0x18] sm:$0xff]
    %v50 = vld [vmem:[#allocation5 + $0x20] sm:$0xff]
    %v51 = vld [vmem:[#allocation5 + $0x28] sm:$0xff]
    %v52 = vld [vmem:[#allocation5 + $0x30] sm:$0xff]
    %v53 = vld [vmem:[#allocation5 + $0x38] sm:$0xff]
    %v54 = vld [vmem:[#allocation5 + $0x40] sm:$0xff]
    %v55 = vld [vmem:[#allocation5 + $0x48] sm:$0xff]
    %v56 = vld [vmem:[#allocation5 + $0x50] sm:$0xf]
    %v57 = vld [vmem:[#allocation5 + $0x58] sm:$0x1]
    %v60 = vrot.slane %v44, 7
    %v61 = vrot.slane %v45, 7
    %vm64 = vcmask 1040384
    %v65 = vsel %vm64, 0.0, %v60
    %v66 = vsel %vm64, 0.0, %v61
    %v67 = vrot.slane %v44, 1
    %v68 = vrot.slane %v45, 1
    %vm71 = vcmask 1046528
    %v72 = vsel %vm71, %v67, 0.0
    %v73 = vsel %vm71, %v68, 0.0
    %74 = vrot.lane.b32.xlu0 %v44, 28
    %v75 = vpop.permute.xlu0 %74
    %76 = vrot.lane.b32.xlu0 %v45, 28
    %v77 = vpop.permute.xlu0 %76
    %82 = vrot.lane.b32.xlu0 %v72, 56
    %v83 = vpop.permute.xlu0 %82
    %84 = vrot.lane.b32.xlu0 %v73, 56
    %v85 = vpop.permute.xlu0 %84
    %vm88 = vcmask 228352
    %v89 = vsel %vm88, %v65, %v75
    %v90 = vsel %vm88, %v66, %v77
    %vm91 = vcmask 457728
    %v92 = vsel %vm91, %v89, %v83
    %v93 = vsel %vm91, %v90, %v85
    %v94 = vperm.slane %v57, 0
    %vm95 = vcmask 687104
    %v97 = vsel %vm95, %v92, 0
    %v100 = vsel %vm95, %v93, 0
    %vm102 = vcmask 1043456
    %v104 = vsel %vm102, %v56, 0
    %106 = vmatpush.msra.mxu0 0.0
    %107 = vmatpush.msra.mxu0 0.0
    %108 = vmatpush.msra.mxu0 0.0
    %109 = vmatpush.msra.mxu0 0.0
    %110 = vmatpush.msra.mxu0 0.0
    %111 = vmatpush.msra.mxu0 %v104
    %112 = vmatpush.msra.mxu0 %v55
    %113 = vmatpush.msra.mxu0 %v54
    %114 = vmatpush.msra.mxu0 %v53
    %115 = vmatpush.msra.mxu0 %v52
    %116 = vmatpush.msra.mxu0 %v51
    %117 = vmatpush.msra.mxu0 %v50
    %118 = vmatpush.msra.mxu0 %v49
    %119 = vmatpush.msra.mxu0 %v48
    %120 = vmatpush.msra.mxu0 %v47
    %121 = vmatpush.msra.mxu0 %v46
    %122 = vmatmul.f32.gmra.mxu0 %v97
    %v123 = vpop.f32.mrf.mxu0
    %v124 = vadd.f32 %v94, %v123
    %125 = vmatmul.f32.gmra.mxu0 %v100
    %v126 = vpop.f32.mrf.mxu0
    %v127 = vadd.f32 %v94, %v126
    %128 = vdwg.mxu0
    %v129 = vmul.f32 %v124, 0.5
    %v130 = vmul.f32 %v127, 0.5
    %v131 = vmul.f32 %v124, 0.70710677
    %v132 = vmul.f32 %v127, 0.70710677
    %vm133 = vcmp.ge.f32.partialorder %v131, 0.0
    %vm134 = vcmp.ge.f32.partialorder %v132, 0.0
    %v135 = vsel %vm133, 1.0, -1.0
    %v136 = vsel %vm134, 1.0, -1.0
    %v137 = vand.u32 2147483647, %v131
    %v138 = vand.u32 2147483647, %v132
    %v139 = vmul.f32 %v137, 0.3275911
    %v140 = vmul.f32 %v138, 0.3275911
    %v141 = vadd.f32 %v139, 1.0
    %v142 = vadd.f32 %v140, 1.0
    %v143 = vrcp.pop %v141
    %v144 = vrcp.pop %v142
    %v145 = vmul.f32 %v143, 1.0614054
    %v146 = vmul.f32 %v144, 1.0614054
    %v147 = vadd.f32 %v145, -1.4531521
    %v148 = vadd.f32 %v146, -1.4531521
    %v149 = vmul.f32 %v147, %v143
    %v150 = vmul.f32 %v148, %v144
    %v151 = vadd.f32 %v149, 1.4214138
    %v152 = vadd.f32 %v150, 1.4214138
    %v153 = vmul.f32 %v151, %v143
    %v154 = vmul.f32 %v152, %v144
    %v155 = vadd.f32 %v153, -0.28449672
    %v156 = vadd.f32 %v154, -0.28449672
    %v157 = vmul.f32 %v155, %v143
    %v158 = vmul.f32 %v156, %v144
    %v159 = vadd.f32 %v157, 0.2548296
    %v160 = vadd.f32 %v158, 0.2548296
    %v161 = vmul.f32 %v159, %v143
    %v162 = vmul.f32 %v160, %v144
    %v163 = vsub.f32 0.0, %v137
    %v164 = vsub.f32 0.0, %v138
    %v165 = vmul.f32 %v163, %v137
    %v166 = vmul.f32 %v164, %v138
    %v167 = vmul.f32 %v165, 1.442695
    %v168 = vpow.pop %v167
    %v169 = vmul.f32 %v166, 1.442695
    %v170 = vpow.pop %v169
    %v171 = vmul.f32 %v161, %v168
    %v172 = vmul.f32 %v162, %v170
    %v173 = vsub.f32 1.0, %v171
    %v174 = vsub.f32 1.0, %v172
    %v175 = vmul.f32 %v135, %v173
    %v176 = vmul.f32 %v136, %v174
    %v177 = vadd.f32 %v175, 1.0
    %v178 = vadd.f32 %v176, 1.0
    %v179 = vmul.f32 %v129, %v177
    %v180 = vmul.f32 %v130, %v178
    %v181 = vld [vmem:[#allocation5 + $0x60] sm:$0xff]
    %v182 = vld [vmem:[#allocation5 + $0x68] sm:$0xff]
    %v183 = vld [vmem:[#allocation5 + $0x70] sm:$0xff]
    %v184 = vld [vmem:[#allocation5 + $0x78] sm:$0xff]
    %v185 = vld [vmem:[#allocation5 + $0x80] sm:$0xff]
    %v186 = vld [vmem:[#allocation5 + $0x88] sm:$0xff]
    %v187 = vld [vmem:[#allocation5 + $0x90] sm:$0xff]
    %v188 = vld [vmem:[#allocation5 + $0x98] sm:$0xff]
    %v189 = vld [vmem:[#allocation5 + $0xa0] sm:$0xff]
    %v190 = vld [vmem:[#allocation5 + $0xa8] sm:$0xff]
    %v191 = vld [vmem:[#allocation5 + $0xb0] sm:$0xff]
    %v192 = vld [vmem:[#allocation5 + $0xb8] sm:$0xff]
    %v193 = vld [vmem:[#allocation5 + $0xc0] sm:$0xff]
    %v194 = vld [vmem:[#allocation5 + $0xc8] sm:$0xf]
    %v195 = vld [vmem:[#allocation5 + $0xd0] sm:$0x1]
    %v198 = vrot.slane %v179, 7
    %v199 = vrot.slane %v180, 7
    %v202 = vsel %vm64, 0.0, %v198
    %v203 = vsel %vm64, 0.0, %v199
    %v204 = vrot.slane %v179, 1
    %v205 = vrot.slane %v180, 1
    %v208 = vsel %vm71, %v204, 0.0
    %v209 = vsel %vm71, %v205, 0.0
    %210 = vrot.lane.b32.xlu0 %v179, 36
    %v211 = vpop.permute.xlu0 %210
    %212 = vrot.lane.b32.xlu0 %v180, 36
    %v213 = vpop.permute.xlu0 %212
    %218 = vrot.lane.b32.xlu0 %v208, 72
    %v219 = vpop.permute.xlu0 %218
    %220 = vrot.lane.b32.xlu0 %v209, 72
    %v221 = vpop.permute.xlu0 %220
    %vm224 = vcmask 293888
    %v225 = vsel %vm224, %v202, %v211
    %v226 = vsel %vm224, %v203, %v213
    %vm227 = vcmask 588800
    %v228 = vsel %vm227, %v225, %v219
    %v229 = vsel %vm227, %v226, %v221
    %v230 = vperm.slane %v195, 0
    %vm231 = vcmask 883712
    %v233 = vsel %vm231, %v228, 0
    %v236 = vsel %vm231, %v229, 0
    %v239 = vsel %vm102, %v194, 0
    %241 = vmatpush.msra.mxu0 0.0
    %242 = vmatpush.msra.mxu0 0.0
    %243 = vmatpush.msra.mxu0 %v239
    %244 = vmatpush.msra.mxu0 %v193
    %245 = vmatpush.msra.mxu0 %v192
    %246 = vmatpush.msra.mxu0 %v191
    %247 = vmatpush.msra.mxu0 %v190
    %248 = vmatpush.msra.mxu0 %v189
    %249 = vmatpush.msra.mxu0 %v188
    %250 = vmatpush.msra.mxu0 %v187
    %251 = vmatpush.msra.mxu0 %v186
    %252 = vmatpush.msra.mxu0 %v185
    %253 = vmatpush.msra.mxu0 %v184
    %254 = vmatpush.msra.mxu0 %v183
    %255 = vmatpush.msra.mxu0 %v182
    %256 = vmatpush.msra.mxu0 %v181
    %257 = vmatmul.f32.gmra.mxu0 %v233
    %v258 = vpop.f32.mrf.mxu0
    %v259 = vadd.f32 %v230, %v258
    %260 = vmatmul.f32.gmra.mxu0 %v236
    %v261 = vpop.f32.mrf.mxu0
    %v262 = vadd.f32 %v230, %v261
    %263 = vdwg.mxu0
    %v264 = vmul.f32 %v259, 0.5
    %v265 = vmul.f32 %v262, 0.5
    %v266 = vmul.f32 %v259, 0.70710677
    %v267 = vmul.f32 %v262, 0.70710677
    %vm268 = vcmp.ge.f32.partialorder %v266, 0.0
    %vm269 = vcmp.ge.f32.partialorder %v267, 0.0
    %v270 = vsel %vm268, 1.0, -1.0
    %v271 = vsel %vm269, 1.0, -1.0
    %v272 = vand.u32 2147483647, %v266
    %v273 = vand.u32 2147483647, %v267
    %v274 = vmul.f32 %v272, 0.3275911
    %v275 = vmul.f32 %v273, 0.3275911
    %v276 = vadd.f32 %v274, 1.0
    %v277 = vadd.f32 %v275, 1.0
    %v278 = vrcp.pop %v276
    %v279 = vrcp.pop %v277
    %v280 = vmul.f32 %v278, 1.0614054
    %v281 = vmul.f32 %v279, 1.0614054
    %v282 = vadd.f32 %v280, -1.4531521
    %v283 = vadd.f32 %v281, -1.4531521
    %v284 = vmul.f32 %v282, %v278
    %v285 = vmul.f32 %v283, %v279
    %v286 = vadd.f32 %v284, 1.4214138
    %v287 = vadd.f32 %v285, 1.4214138
    %v288 = vmul.f32 %v286, %v278
    %v289 = vmul.f32 %v287, %v279
    %v290 = vadd.f32 %v288, -0.28449672
    %v291 = vadd.f32 %v289, -0.28449672
    %v292 = vmul.f32 %v290, %v278
    %v293 = vmul.f32 %v291, %v279
    %v294 = vadd.f32 %v292, 0.2548296
    %v295 = vadd.f32 %v293, 0.2548296
    %v296 = vmul.f32 %v294, %v278
    %v297 = vmul.f32 %v295, %v279
    %v298 = vsub.f32 0.0, %v272
    %v299 = vsub.f32 0.0, %v273
    %v300 = vmul.f32 %v298, %v272
    %v301 = vmul.f32 %v299, %v273
    %v302 = vmul.f32 %v300, 1.442695
    %v303 = vpow.pop %v302
    %v304 = vmul.f32 %v301, 1.442695
    %v305 = vpow.pop %v304
    %v306 = vmul.f32 %v296, %v303
    %v307 = vmul.f32 %v297, %v305
    %v308 = vsub.f32 1.0, %v306
    %v309 = vsub.f32 1.0, %v307
    %v310 = vmul.f32 %v270, %v308
    %v311 = vmul.f32 %v271, %v309
    %v312 = vadd.f32 %v310, 1.0
    %v313 = vadd.f32 %v311, 1.0
    %v314 = vmul.f32 %v264, %v312
    %v315 = vmul.f32 %v265, %v313
    %v316 = vsel %vm224, %v314, 0.0
    %v317 = vrot.slane %v316, 4
    %v318 = vadd.f32 %v316, %v317
    %v319 = vrot.slane %v318, 2
    %v320 = vadd.f32 %v318, %v319
    %v321 = vrot.slane %v320, 1
    %v322 = vadd.f32 %v320, %v321
    %v323 = vsel %vm224, %v315, 0.0
    %v324 = vrot.slane %v323, 4
    %v325 = vadd.f32 %v323, %v324
    %v326 = vrot.slane %v325, 2
    %v327 = vadd.f32 %v325, %v326
    %v328 = vrot.slane %v327, 1
    %v329 = vadd.f32 %v327, %v328
    %v330 = vrcp.pop 8.0
    %v331 = vmul.f32 8.0, %v330
    %v332 = vsub.f32 1.0, %v331
    %v333 = vmul.f32 %v330, %v332
    %v334 = vadd.f32 %v330, %v333
    %vm335 = vweird.f32 %v330
    %v336 = vsel %vm335, %v330, %v334
    %v337 = vmul.f32 %v322, %v336
    %v338 = vmul.f32 %v329, %v336
    %v339 = vld [vmem:[#allocation5 + $0xd8] sm:$0xf]
    %v340 = vld [vmem:[#allocation5 + $0x108] sm:$0x1]
    %v341 = vperm.slane %v340, 0
    %vm342 = vcmask 31744
    %v343 = vsel %vm342, %v44, 0
    %v345 = vsel %vm342, %v45, 0
    %v348 = vsel %vm102, %v339, 0
    %350 = vmatpush.msra.mxu0 0.0
    %351 = vmatpush.msra.mxu0 0.0
    %352 = vmatpush.msra.mxu0 0.0
    %353 = vmatpush.msra.mxu0 0.0
    %354 = vmatpush.msra.mxu0 0.0
    %355 = vmatpush.msra.mxu0 0.0
    %356 = vmatpush.msra.mxu0 0.0
    %357 = vmatpush.msra.mxu0 0.0
    %358 = vmatpush.msra.mxu0 0.0
    %359 = vmatpush.msra.mxu0 0.0
    %360 = vmatpush.msra.mxu0 0.0
    %361 = vmatpush.msra.mxu0 0.0
    %362 = vmatpush.msra.mxu0 0.0
    %363 = vmatpush.msra.mxu0 0.0
    %364 = vmatpush.msra.mxu0 0.0
    %365 = vmatpush.msra.mxu0 %v348
    %366 = vmatmul.f32.gmra.mxu0 %v343
    %v367 = vpop.f32.mrf.mxu0
    %v368 = vadd.f32 %v341, %v367
    %369 = vmatmul.f32.gmra.mxu0 %v345
    %v370 = vpop.f32.mrf.mxu0
    %v371 = vadd.f32 %v341, %v370
    %372 = vdwg.mxu0
    %v373 = vld [vmem:[#allocation5 + $0xe0] sm:$0xf]
    %v375 = vsel %vm102, %v373, 0
    %377 = vmatpush.msra.mxu0 0.0
    %378 = vmatpush.msra.mxu0 0.0
    %379 = vmatpush.msra.mxu0 0.0
    %380 = vmatpush.msra.mxu0 0.0
    %381 = vmatpush.msra.mxu0 0.0
    %382 = vmatpush.msra.mxu0 0.0
    %383 = vmatpush.msra.mxu0 0.0
    %384 = vmatpush.msra.mxu0 0.0
    %385 = vmatpush.msra.mxu0 0.0
    %386 = vmatpush.msra.mxu0 0.0
    %387 = vmatpush.msra.mxu0 0.0
    %388 = vmatpush.msra.mxu0 0.0
    %389 = vmatpush.msra.mxu0 0.0
    %390 = vmatpush.msra.mxu0 0.0
    %391 = vmatpush.msra.mxu0 0.0
    %392 = vmatpush.msra.mxu0 %v375
    %393 = vmatmul.f32.gmra.mxu0 %v343
    %v394 = vpop.f32.mrf.mxu0
    %v395 = vadd.f32 0.0, %v394
    %396 = vmatmul.f32.gmra.mxu0 %v345
    %v397 = vpop.f32.mrf.mxu0
    %v398 = vadd.f32 0.0, %v397
    %399 = vdwg.mxu0
    %v402 = vrot.slane %v395, 7
    %v403 = vrot.slane %v398, 7
    %v406 = vadd.f32 %v368, %v402
    %v407 = vadd.f32 %v371, %v403
    %v408 = vrot.slane %v395, 5
    %v409 = vrot.slane %v398, 5
    %v412 = vadd.f32 %v368, %v408
    %v413 = vadd.f32 %v371, %v409
    %v414 = vrot.slane %v395, 3
    %v415 = vrot.slane %v398, 3
    %v418 = vadd.f32 %v368, %v414
    %v419 = vadd.f32 %v371, %v415
    %v420 = vrot.slane %v395, 1
    %v421 = vrot.slane %v398, 1
    %v424 = vadd.f32 %v368, %v420
    %v425 = vadd.f32 %v371, %v421
    %v426 = vld [vmem:[#allocation5 + $0xe8] sm:$0xff]
    %v427 = vld [vmem:[#allocation5 + $0xf0] sm:$0xff]
    %v428 = vld [vmem:[#allocation5 + $0xf8] sm:$0xff]
    %v429 = vld [vmem:[#allocation5 + $0x100] sm:$0xff]
    %vm430 = vcmask 261120
    %v432 = vsel %vm430, 0.0, 0
    %434 = vmatpush.msra.mxu0 0.0
    %435 = vmatpush.msra.mxu0 0.0
    %436 = vmatpush.msra.mxu0 0.0
    %437 = vmatpush.msra.mxu0 0.0
    %438 = vmatpush.msra.mxu0 0.0
    %439 = vmatpush.msra.mxu0 0.0
    %440 = vmatpush.msra.mxu0 0.0
    %441 = vmatpush.msra.mxu0 0.0
    %442 = vmatpush.msra.mxu0 0.0
    %443 = vmatpush.msra.mxu0 0.0
    %444 = vmatpush.msra.mxu0 0.0
    %445 = vmatpush.msra.mxu0 0.0
    %446 = vmatpush.msra.mxu0 %v429
    %447 = vmatpush.msra.mxu0 %v428
    %448 = vmatpush.msra.mxu0 %v427
    %449 = vmatpush.msra.mxu0 %v426
    %450 = vmatmul.f32.gmra.mxu0 %v432
    %v451 = vpop.f32.mrf.mxu0
    %v452 = vadd.f32 0.0, %v451
    %453 = vdwg.mxu0
    %v455 = vrot.slane %v452, 1
    %v458 = vadd.f32 %v406, %v452
    %v459 = vadd.f32 %v407, %v455
    %v460 = vxor.u32 %v458, 2147483648
    %v461 = vxor.u32 %v459, 2147483648
    %v462 = vmul.f32 %v460, 1.442695
    %v463 = vpow.pop %v462
    %v464 = vmul.f32 %v461, 1.442695
    %v465 = vpow.pop %v464
    %v466 = vadd.f32 %v463, 1.0
    %v467 = vadd.f32 %v465, 1.0
    %v468 = vrcp.pop %v466
    %v469 = vmul.f32 %v466, %v468
    %v470 = vsub.f32 1.0, %v469
    %v471 = vmul.f32 %v468, %v470
    %v472 = vadd.f32 %v468, %v471
    %vm473 = vweird.f32 %v466
    %vm474 = vweird.f32 %v468
    %vm475 = vmor %vm473, %vm474
    %v476 = vsel %vm475, %v468, %v472
    %v477 = vand.u32 2147483647, %v466
    %vm478 = vcmp.eq.f32.partialorder %v477, 8.507059e+37
    %v479 = vand.u32 %v466, 2147483648
    %v480 = vor.u32 1.1754944e-38, %v479
    %v481 = vsel %vm478, %v480, %v476
    %v482 = vmul.f32 1.0, %v481
    %v483 = vrcp.pop %v467
    %v484 = vmul.f32 %v467, %v483
    %v485 = vsub.f32 1.0, %v484
    %v486 = vmul.f32 %v483, %v485
    %v487 = vadd.f32 %v483, %v486
    %vm488 = vweird.f32 %v467
    %vm489 = vweird.f32 %v483
    %vm490 = vmor %vm488, %vm489
    %v491 = vsel %vm490, %v483, %v487
    %v492 = vand.u32 2147483647, %v467
    %vm493 = vcmp.eq.f32.partialorder %v492, 8.507059e+37
    %v494 = vand.u32 %v467, 2147483648
    %v495 = vor.u32 1.1754944e-38, %v494
    %v496 = vsel %vm493, %v495, %v491
    %v497 = vmul.f32 1.0, %v496
    %v498 = vtanh.pop %v458
    %v499 = vtanh.pop %v459
    %v500 = vmul.f32 %v482, 0.0
    %v501 = vmul.f32 %v497, 0.0
    %504 = vrot.lane.b32.xlu0 %v498, 32
    %v505 = vpop.permute.xlu0 %504
    %506 = vrot.lane.b32.xlu0 %v499, 32
    %v507 = vpop.permute.xlu0 %506
    %v510 = vmul.f32 %v482, %v505
    %v511 = vmul.f32 %v497, %v507
    %514 = vrot.lane.b32.xlu0 %v510, 32
    %v515 = vpop.permute.xlu0 %514
    %516 = vrot.lane.b32.xlu0 %v511, 32
    %v517 = vpop.permute.xlu0 %516
    %v520 = vadd.f32 %v500, %v515
    %v521 = vadd.f32 %v501, %v517
    %v522 = vtanh.pop %v520
    %v523 = vtanh.pop %v521
    %526 = vrot.lane.b32.xlu0 %v522, 32
    %v527 = vpop.permute.xlu0 %526
    %528 = vrot.lane.b32.xlu0 %v523, 32
    %v529 = vpop.permute.xlu0 %528
    %v532 = vmul.f32 %v482, %v527
    %v533 = vmul.f32 %v497, %v529
    %v536 = vrot.slane %v533, 7
    %vm537 = vcmask 1041409
    %v538 = vsel %vm537, %v536, %v532
    %539 = vrot.lane.b32.xlu0 %v538, 64
    %v540 = vpop.permute.xlu0 %539
    %v541 = vsel %vm430, %v540, 0
    %543 = vmatpush.msra.mxu0 0.0
    %544 = vmatpush.msra.mxu0 0.0
    %545 = vmatpush.msra.mxu0 0.0
    %546 = vmatpush.msra.mxu0 0.0
    %547 = vmatpush.msra.mxu0 0.0
    %548 = vmatpush.msra.mxu0 0.0
    %549 = vmatpush.msra.mxu0 0.0
    %550 = vmatpush.msra.mxu0 0.0
    %551 = vmatpush.msra.mxu0 0.0
    %552 = vmatpush.msra.mxu0 0.0
    %553 = vmatpush.msra.mxu0 0.0
    %554 = vmatpush.msra.mxu0 0.0
    %555 = vmatpush.msra.mxu0 %v429
    %556 = vmatpush.msra.mxu0 %v428
    %557 = vmatpush.msra.mxu0 %v427
    %558 = vmatpush.msra.mxu0 %v426
    %559 = vmatmul.f32.gmra.mxu0 %v541
    %v560 = vpop.f32.mrf.mxu0
    %v561 = vadd.f32 0.0, %v560
    %562 = vdwg.mxu0
    %v564 = vrot.slane %v561, 7
    %v567 = vadd.f32 %v412, %v564
    %v568 = vadd.f32 %v413, %v561
    %v569 = vxor.u32 %v567, 2147483648
    %v570 = vxor.u32 %v568, 2147483648
    %v571 = vmul.f32 %v569, 1.442695
    %v572 = vpow.pop %v571
    %v573 = vmul.f32 %v570, 1.442695
    %v574 = vpow.pop %v573
    %v575 = vadd.f32 %v572, 1.0
    %v576 = vadd.f32 %v574, 1.0
    %v577 = vrcp.pop %v575
    %v578 = vmul.f32 %v575, %v577
    %v579 = vsub.f32 1.0, %v578
    %v580 = vmul.f32 %v577, %v579
    %v581 = vadd.f32 %v577, %v580
    %vm582 = vweird.f32 %v575
    %vm583 = vweird.f32 %v577
    %vm584 = vmor %vm582, %vm583
    %v585 = vsel %vm584, %v577, %v581
    %v586 = vand.u32 2147483647, %v575
    %vm587 = vcmp.eq.f32.partialorder %v586, 8.507059e+37
    %v588 = vand.u32 %v575, 2147483648
    %v589 = vor.u32 1.1754944e-38, %v588
    %v590 = vsel %vm587, %v589, %v585
    %v591 = vmul.f32 1.0, %v590
    %v592 = vrcp.pop %v576
    %v593 = vmul.f32 %v576, %v592
    %v594 = vsub.f32 1.0, %v593
    %v595 = vmul.f32 %v592, %v594
    %v596 = vadd.f32 %v592, %v595
    %vm597 = vweird.f32 %v576
    %vm598 = vweird.f32 %v592
    %vm599 = vmor %vm597, %vm598
    %v600 = vsel %vm599, %v592, %v596
    %v601 = vand.u32 2147483647, %v576
    %vm602 = vcmp.eq.f32.partialorder %v601, 8.507059e+37
    %v603 = vand.u32 %v576, 2147483648
    %v604 = vor.u32 1.1754944e-38, %v603
    %v605 = vsel %vm602, %v604, %v600
    %v606 = vmul.f32 1.0, %v605
    %v607 = vtanh.pop %v567
    %v608 = vtanh.pop %v568
    %v611 = vrot.slane %v520, 7
    %v612 = vrot.slane %v521, 7
    %v615 = vmul.f32 %v591, %v611
    %v616 = vmul.f32 %v606, %v612
    %619 = vrot.lane.b32.xlu0 %v607, 32
    %v620 = vpop.permute.xlu0 %619
    %621 = vrot.lane.b32.xlu0 %v608, 32
    %v622 = vpop.permute.xlu0 %621
    %v625 = vmul.f32 %v591, %v620
    %v626 = vmul.f32 %v606, %v622
    %629 = vrot.lane.b32.xlu0 %v625, 32
    %v630 = vpop.permute.xlu0 %629
    %631 = vrot.lane.b32.xlu0 %v626, 32
    %v632 = vpop.permute.xlu0 %631
    %v635 = vadd.f32 %v615, %v630
    %v636 = vadd.f32 %v616, %v632
    %v637 = vtanh.pop %v635
    %v638 = vtanh.pop %v636
    %641 = vrot.lane.b32.xlu0 %v637, 32
    %v642 = vpop.permute.xlu0 %641
    %643 = vrot.lane.b32.xlu0 %v638, 32
    %v644 = vpop.permute.xlu0 %643
    %v647 = vmul.f32 %v591, %v642
    %v648 = vmul.f32 %v606, %v644
    %v651 = vrot.slane %v647, 1
    %v652 = vsel %vm537, %v648, %v651
    %653 = vrot.lane.b32.xlu0 %v652, 64
    %v654 = vpop.permute.xlu0 %653
    %v655 = vsel %vm430, %v654, 0
    %657 = vmatpush.msra.mxu0 0.0
    %658 = vmatpush.msra.mxu0 0.0
    %659 = vmatpush.msra.mxu0 0.0
    %660 = vmatpush.msra.mxu0 0.0
    %661 = vmatpush.msra.mxu0 0.0
    %662 = vmatpush.msra.mxu0 0.0
    %663 = vmatpush.msra.mxu0 0.0
    %664 = vmatpush.msra.mxu0 0.0
    %665 = vmatpush.msra.mxu0 0.0
    %666 = vmatpush.msra.mxu0 0.0
    %667 = vmatpush.msra.mxu0 0.0
    %668 = vmatpush.msra.mxu0 0.0
    %669 = vmatpush.msra.mxu0 %v429
    %670 = vmatpush.msra.mxu0 %v428
    %671 = vmatpush.msra.mxu0 %v427
    %672 = vmatpush.msra.mxu0 %v426
    %673 = vmatmul.f32.gmra.mxu0 %v655
    %v674 = vpop.f32.mrf.mxu0
    %v675 = vadd.f32 0.0, %v674
    %676 = vdwg.mxu0
    %v678 = vrot.slane %v675, 6
    %v679 = vrot.slane %v675, 7
    %v682 = vadd.f32 %v418, %v678
    %v683 = vadd.f32 %v419, %v679
    %v684 = vxor.u32 %v682, 2147483648
    %v685 = vxor.u32 %v683, 2147483648
    %v686 = vmul.f32 %v684, 1.442695
    %v687 = vpow.pop %v686
    %v688 = vmul.f32 %v685, 1.442695
    %v689 = vpow.pop %v688
    %v690 = vadd.f32 %v687, 1.0
    %v691 = vadd.f32 %v689, 1.0
    %v692 = vrcp.pop %v690
    %v693 = vmul.f32 %v690, %v692
    %v694 = vsub.f32 1.0, %v693
    %v695 = vmul.f32 %v692, %v694
    %v696 = vadd.f32 %v692, %v695
    %vm697 = vweird.f32 %v690
    %vm698 = vweird.f32 %v692
    %vm699 = vmor %vm697, %vm698
    %v700 = vsel %vm699, %v692, %v696
    %v701 = vand.u32 2147483647, %v690
    %vm702 = vcmp.eq.f32.partialorder %v701, 8.507059e+37
    %v703 = vand.u32 %v690, 2147483648
    %v704 = vor.u32 1.1754944e-38, %v703
    %v705 = vsel %vm702, %v704, %v700
    %v706 = vmul.f32 1.0, %v705
    %v707 = vrcp.pop %v691
    %v708 = vmul.f32 %v691, %v707
    %v709 = vsub.f32 1.0, %v708
    %v710 = vmul.f32 %v707, %v709
    %v711 = vadd.f32 %v707, %v710
    %vm712 = vweird.f32 %v691
    %vm713 = vweird.f32 %v707
    %vm714 = vmor %vm712, %vm713
    %v715 = vsel %vm714, %v707, %v711
    %v716 = vand.u32 2147483647, %v691
    %vm717 = vcmp.eq.f32.partialorder %v716, 8.507059e+37
    %v718 = vand.u32 %v691, 2147483648
    %v719 = vor.u32 1.1754944e-38, %v718
    %v720 = vsel %vm717, %v719, %v715
    %v721 = vmul.f32 1.0, %v720
    %v722 = vtanh.pop %v682
    %v723 = vtanh.pop %v683
    %v726 = vrot.slane %v635, 7
    %v727 = vrot.slane %v636, 7
    %v730 = vmul.f32 %v706, %v726
    %v731 = vmul.f32 %v721, %v727
    %734 = vrot.lane.b32.xlu0 %v722, 32
    %v735 = vpop.permute.xlu0 %734
    %736 = vrot.lane.b32.xlu0 %v723, 32
    %v737 = vpop.permute.xlu0 %736
    %v740 = vmul.f32 %v706, %v735
    %v741 = vmul.f32 %v721, %v737
    %744 = vrot.lane.b32.xlu0 %v740, 32
    %v745 = vpop.permute.xlu0 %744
    %746 = vrot.lane.b32.xlu0 %v741, 32
    %v747 = vpop.permute.xlu0 %746
    %v750 = vadd.f32 %v730, %v745
    %v751 = vadd.f32 %v731, %v747
    %v752 = vtanh.pop %v750
    %v753 = vtanh.pop %v751
    %756 = vrot.lane.b32.xlu0 %v752, 32
    %v757 = vpop.permute.xlu0 %756
    %758 = vrot.lane.b32.xlu0 %v753, 32
    %v759 = vpop.permute.xlu0 %758
    %v762 = vmul.f32 %v706, %v757
    %v763 = vmul.f32 %v721, %v759
    %v766 = vrot.slane %v762, 2
    %v767 = vrot.slane %v763, 1
    %v768 = vsel %vm537, %v767, %v766
    %769 = vrot.lane.b32.xlu0 %v768, 64
    %v770 = vpop.permute.xlu0 %769
    %v771 = vsel %vm430, %v770, 0
    %773 = vmatpush.msra.mxu0 0.0
    %774 = vmatpush.msra.mxu0 0.0
    %775 = vmatpush.msra.mxu0 0.0
    %776 = vmatpush.msra.mxu0 0.0
    %777 = vmatpush.msra.mxu0 0.0
    %778 = vmatpush.msra.mxu0 0.0
    %779 = vmatpush.msra.mxu0 0.0
    %780 = vmatpush.msra.mxu0 0.0
    %781 = vmatpush.msra.mxu0 0.0
    %782 = vmatpush.msra.mxu0 0.0
    %783 = vmatpush.msra.mxu0 0.0
    %784 = vmatpush.msra.mxu0 0.0
    %785 = vmatpush.msra.mxu0 %v429
    %786 = vmatpush.msra.mxu0 %v428
    %787 = vmatpush.msra.mxu0 %v427
    %788 = vmatpush.msra.mxu0 %v426
    %789 = vmatmul.f32.gmra.mxu0 %v771
    %v790 = vpop.f32.mrf.mxu0
    %v791 = vadd.f32 0.0, %v790
    %792 = vdwg.mxu0
    %v794 = vrot.slane %v791, 5
    %v795 = vrot.slane %v791, 6
    %v798 = vadd.f32 %v424, %v794
    %v799 = vadd.f32 %v425, %v795
    %v800 = vxor.u32 %v798, 2147483648
    %v801 = vxor.u32 %v799, 2147483648
    %v802 = vmul.f32 %v800, 1.442695
    %v803 = vpow.pop %v802
    %v804 = vmul.f32 %v801, 1.442695
    %v805 = vpow.pop %v804
    %v806 = vadd.f32 %v803, 1.0
    %v807 = vadd.f32 %v805, 1.0
    %v808 = vrcp.pop %v806
    %v809 = vmul.f32 %v806, %v808
    %v810 = vsub.f32 1.0, %v809
    %v811 = vmul.f32 %v808, %v810
    %v812 = vadd.f32 %v808, %v811
    %vm813 = vweird.f32 %v806
    %vm814 = vweird.f32 %v808
    %vm815 = vmor %vm813, %vm814
    %v816 = vsel %vm815, %v808, %v812
    %v817 = vand.u32 2147483647, %v806
    %vm818 = vcmp.eq.f32.partialorder %v817, 8.507059e+37
    %v819 = vand.u32 %v806, 2147483648
    %v820 = vor.u32 1.1754944e-38, %v819
    %v821 = vsel %vm818, %v820, %v816
    %v822 = vmul.f32 1.0, %v821
    %v823 = vrcp.pop %v807
    %v824 = vmul.f32 %v807, %v823
    %v825 = vsub.f32 1.0, %v824
    %v826 = vmul.f32 %v823, %v825
    %v827 = vadd.f32 %v823, %v826
    %vm828 = vweird.f32 %v807
    %vm829 = vweird.f32 %v823
    %vm830 = vmor %vm828, %vm829
    %v831 = vsel %vm830, %v823, %v827
    %v832 = vand.u32 2147483647, %v807
    %vm833 = vcmp.eq.f32.partialorder %v832, 8.507059e+37
    %v834 = vand.u32 %v807, 2147483648
    %v835 = vor.u32 1.1754944e-38, %v834
    %v836 = vsel %vm833, %v835, %v831
    %v837 = vmul.f32 1.0, %v836
    %v838 = vtanh.pop %v798
    %v839 = vtanh.pop %v799
    %v842 = vrot.slane %v750, 7
    %v843 = vrot.slane %v751, 7
    %v846 = vmul.f32 %v822, %v842
    %v847 = vmul.f32 %v837, %v843
    %850 = vrot.lane.b32.xlu0 %v838, 32
    %v851 = vpop.permute.xlu0 %850
    %852 = vrot.lane.b32.xlu0 %v839, 32
    %v853 = vpop.permute.xlu0 %852
    %v856 = vmul.f32 %v822, %v851
    %v857 = vmul.f32 %v837, %v853
    %860 = vrot.lane.b32.xlu0 %v856, 32
    %v861 = vpop.permute.xlu0 %860
    %862 = vrot.lane.b32.xlu0 %v857, 32
    %v863 = vpop.permute.xlu0 %862
    %v866 = vadd.f32 %v846, %v861
    %v867 = vadd.f32 %v847, %v863
    %v868 = vtanh.pop %v866
    %v869 = vtanh.pop %v867
    %872 = vrot.lane.b32.xlu0 %v868, 32
    %v873 = vpop.permute.xlu0 %872
    %874 = vrot.lane.b32.xlu0 %v869, 32
    %v875 = vpop.permute.xlu0 %874
    %v878 = vmul.f32 %v822, %v873
    %v879 = vmul.f32 %v837, %v875
    %v882 = vrot.slane %v878, 3
    %v883 = vrot.slane %v879, 2
    %v884 = vsel %vm537, %v883, %v882
    %885 = vrot.lane.b32.xlu0 %v884, 64
    %v886 = vpop.permute.xlu0 %885
    %v887 = vsel %vm430, %v886, 0
    %889 = vmatpush.msra.mxu0 0.0
    %890 = vmatpush.msra.mxu0 0.0
    %891 = vmatpush.msra.mxu0 0.0
    %892 = vmatpush.msra.mxu0 0.0
    %893 = vmatpush.msra.mxu0 0.0
    %894 = vmatpush.msra.mxu0 0.0
    %895 = vmatpush.msra.mxu0 0.0
    %896 = vmatpush.msra.mxu0 0.0
    %897 = vmatpush.msra.mxu0 0.0
    %898 = vmatpush.msra.mxu0 0.0
    %899 = vmatpush.msra.mxu0 0.0
    %900 = vmatpush.msra.mxu0 0.0
    %901 = vmatpush.msra.mxu0 %v429
    %902 = vmatpush.msra.mxu0 %v428
    %903 = vmatpush.msra.mxu0 %v427
    %904 = vmatpush.msra.mxu0 %v426
    %905 = vmatmul.f32.gmra.mxu0 %v887
    %v906 = vpop.f32.mrf.mxu0
    %v907 = vadd.f32 0.0, %v906
    %908 = vdwg.mxu0
    %v910 = vrot.slane %v907, 4
    %v911 = vrot.slane %v907, 5
    %v914 = vadd.f32 %v406, %v910
    %v915 = vadd.f32 %v407, %v911
    %v916 = vxor.u32 %v914, 2147483648
    %v917 = vxor.u32 %v915, 2147483648
    %v918 = vmul.f32 %v916, 1.442695
    %v919 = vpow.pop %v918
    %v920 = vmul.f32 %v917, 1.442695
    %v921 = vpow.pop %v920
    %v922 = vadd.f32 %v919, 1.0
    %v923 = vadd.f32 %v921, 1.0
    %v924 = vrcp.pop %v922
    %v925 = vmul.f32 %v922, %v924
    %v926 = vsub.f32 1.0, %v925
    %v927 = vmul.f32 %v924, %v926
    %v928 = vadd.f32 %v924, %v927
    %vm929 = vweird.f32 %v922
    %vm930 = vweird.f32 %v924
    %vm931 = vmor %vm929, %vm930
    %v932 = vsel %vm931, %v924, %v928
    %v933 = vand.u32 2147483647, %v922
    %vm934 = vcmp.eq.f32.partialorder %v933, 8.507059e+37
    %v935 = vand.u32 %v922, 2147483648
    %v936 = vor.u32 1.1754944e-38, %v935
    %v937 = vsel %vm934, %v936, %v932
    %v938 = vmul.f32 1.0, %v937
    %v939 = vrcp.pop %v923
    %v940 = vmul.f32 %v923, %v939
    %v941 = vsub.f32 1.0, %v940
    %v942 = vmul.f32 %v939, %v941
    %v943 = vadd.f32 %v939, %v942
    %vm944 = vweird.f32 %v923
    %vm945 = vweird.f32 %v939
    %vm946 = vmor %vm944, %vm945
    %v947 = vsel %vm946, %v939, %v943
    %v948 = vand.u32 2147483647, %v923
    %vm949 = vcmp.eq.f32.partialorder %v948, 8.507059e+37
    %v950 = vand.u32 %v923, 2147483648
    %v951 = vor.u32 1.1754944e-38, %v950
    %v952 = vsel %vm949, %v951, %v947
    %v953 = vmul.f32 1.0, %v952
    %v954 = vtanh.pop %v914
    %v955 = vtanh.pop %v915
    %v958 = vrot.slane %v866, 7
    %v959 = vrot.slane %v867, 7
    %v962 = vmul.f32 %v938, %v958
    %v963 = vmul.f32 %v953, %v959
    %966 = vrot.lane.b32.xlu0 %v954, 32
    %v967 = vpop.permute.xlu0 %966
    %968 = vrot.lane.b32.xlu0 %v955, 32
    %v969 = vpop.permute.xlu0 %968
    %v972 = vmul.f32 %v938, %v967
    %v973 = vmul.f32 %v953, %v969
    %976 = vrot.lane.b32.xlu0 %v972, 32
    %v977 = vpop.permute.xlu0 %976
    %978 = vrot.lane.b32.xlu0 %v973, 32
    %v979 = vpop.permute.xlu0 %978
    %v982 = vadd.f32 %v962, %v977
    %v983 = vadd.f32 %v963, %v979
    %v984 = vtanh.pop %v982
    %v985 = vtanh.pop %v983
    %988 = vrot.lane.b32.xlu0 %v984, 32
    %v989 = vpop.permute.xlu0 %988
    %990 = vrot.lane.b32.xlu0 %v985, 32
    %v991 = vpop.permute.xlu0 %990
    %v994 = vmul.f32 %v938, %v989
    %v995 = vmul.f32 %v953, %v991
    %v998 = vrot.slane %v994, 4
    %v999 = vrot.slane %v995, 3
    %v1000 = vsel %vm537, %v999, %v998
    %1001 = vrot.lane.b32.xlu0 %v1000, 64
    %v1002 = vpop.permute.xlu0 %1001
    %v1003 = vsel %vm430, %v1002, 0
    %1005 = vmatpush.msra.mxu0 0.0
    %1006 = vmatpush.msra.mxu0 0.0
    %1007 = vmatpush.msra.mxu0 0.0
    %1008 = vmatpush.msra.mxu0 0.0
    %1009 = vmatpush.msra.mxu0 0.0
    %1010 = vmatpush.msra.mxu0 0.0
    %1011 = vmatpush.msra.mxu0 0.0
    %1012 = vmatpush.msra.mxu0 0.0
    %1013 = vmatpush.msra.mxu0 0.0
    %1014 = vmatpush.msra.mxu0 0.0
    %1015 = vmatpush.msra.mxu0 0.0
    %1016 = vmatpush.msra.mxu0 0.0
    %1017 = vmatpush.msra.mxu0 %v429
    %1018 = vmatpush.msra.mxu0 %v428
    %1019 = vmatpush.msra.mxu0 %v427
    %1020 = vmatpush.msra.mxu0 %v426
    %1021 = vmatmul.f32.gmra.mxu0 %v1003
    %v1022 = vpop.f32.mrf.mxu0
    %v1023 = vadd.f32 0.0, %v1022
    %1024 = vdwg.mxu0
    %v1026 = vrot.slane %v1023, 3
    %v1027 = vrot.slane %v1023, 4
    %v1030 = vadd.f32 %v412, %v1026
    %v1031 = vadd.f32 %v413, %v1027
    %v1032 = vxor.u32 %v1030, 2147483648
    %v1033 = vxor.u32 %v1031, 2147483648
    %v1034 = vmul.f32 %v1032, 1.442695
    %v1035 = vpow.pop %v1034
    %v1036 = vmul.f32 %v1033, 1.442695
    %v1037 = vpow.pop %v1036
    %v1038 = vadd.f32 %v1035, 1.0
    %v1039 = vadd.f32 %v1037, 1.0
    %v1040 = vrcp.pop %v1038
    %v1041 = vmul.f32 %v1038, %v1040
    %v1042 = vsub.f32 1.0, %v1041
    %v1043 = vmul.f32 %v1040, %v1042
    %v1044 = vadd.f32 %v1040, %v1043
    %vm1045 = vweird.f32 %v1038
    %vm1046 = vweird.f32 %v1040
    %vm1047 = vmor %vm1045, %vm1046
    %v1048 = vsel %vm1047, %v1040, %v1044
    %v1049 = vand.u32 2147483647, %v1038
    %vm1050 = vcmp.eq.f32.partialorder %v1049, 8.507059e+37
    %v1051 = vand.u32 %v1038, 2147483648
    %v1052 = vor.u32 1.1754944e-38, %v1051
    %v1053 = vsel %vm1050, %v1052, %v1048
    %v1054 = vmul.f32 1.0, %v1053
    %v1055 = vrcp.pop %v1039
    %v1056 = vmul.f32 %v1039, %v1055
    %v1057 = vsub.f32 1.0, %v1056
    %v1058 = vmul.f32 %v1055, %v1057
    %v1059 = vadd.f32 %v1055, %v1058
    %vm1060 = vweird.f32 %v1039
    %vm1061 = vweird.f32 %v1055
    %vm1062 = vmor %vm1060, %vm1061
    %v1063 = vsel %vm1062, %v1055, %v1059
    %v1064 = vand.u32 2147483647, %v1039
    %vm1065 = vcmp.eq.f32.partialorder %v1064, 8.507059e+37
    %v1066 = vand.u32 %v1039, 2147483648
    %v1067 = vor.u32 1.1754944e-38, %v1066
    %v1068 = vsel %vm1065, %v1067, %v1063
    %v1069 = vmul.f32 1.0, %v1068
    %v1070 = vtanh.pop %v1030
    %v1071 = vtanh.pop %v1031
    %v1074 = vrot.slane %v982, 7
    %v1075 = vrot.slane %v983, 7
    %v1078 = vmul.f32 %v1054, %v1074
    %v1079 = vmul.f32 %v1069, %v1075
    %1082 = vrot.lane.b32.xlu0 %v1070, 32
    %v1083 = vpop.permute.xlu0 %1082
    %1084 = vrot.lane.b32.xlu0 %v1071, 32
    %v1085 = vpop.permute.xlu0 %1084
    %v1088 = vmul.f32 %v1054, %v1083
    %v1089 = vmul.f32 %v1069, %v1085
    %1092 = vrot.lane.b32.xlu0 %v1088, 32
    %v1093 = vpop.permute.xlu0 %1092
    %1094 = vrot.lane.b32.xlu0 %v1089, 32
    %v1095 = vpop.permute.xlu0 %1094
    %v1098 = vadd.f32 %v1078, %v1093
    %v1099 = vadd.f32 %v1079, %v1095
    %v1100 = vtanh.pop %v1098
    %v1101 = vtanh.pop %v1099
    %1104 = vrot.lane.b32.xlu0 %v1100, 32
    %v1105 = vpop.permute.xlu0 %1104
    %1106 = vrot.lane.b32.xlu0 %v1101, 32
    %v1107 = vpop.permute.xlu0 %1106
    %v1110 = vmul.f32 %v1054, %v1105
    %v1111 = vmul.f32 %v1069, %v1107
    %v1114 = vrot.slane %v1110, 5
    %v1115 = vrot.slane %v1111, 4
    %v1116 = vsel %vm537, %v1115, %v1114
    %1117 = vrot.lane.b32.xlu0 %v1116, 64
    %v1118 = vpop.permute.xlu0 %1117
    %v1119 = vsel %vm430, %v1118, 0
    %1121 = vmatpush.msra.mxu0 0.0
    %1122 = vmatpush.msra.mxu0 0.0
    %1123 = vmatpush.msra.mxu0 0.0
    %1124 = vmatpush.msra.mxu0 0.0
    %1125 = vmatpush.msra.mxu0 0.0
    %1126 = vmatpush.msra.mxu0 0.0
    %1127 = vmatpush.msra.mxu0 0.0
    %1128 = vmatpush.msra.mxu0 0.0
    %1129 = vmatpush.msra.mxu0 0.0
    %1130 = vmatpush.msra.mxu0 0.0
    %1131 = vmatpush.msra.mxu0 0.0
    %1132 = vmatpush.msra.mxu0 0.0
    %1133 = vmatpush.msra.mxu0 %v429
    %1134 = vmatpush.msra.mxu0 %v428
    %1135 = vmatpush.msra.mxu0 %v427
    %1136 = vmatpush.msra.mxu0 %v426
    %1137 = vmatmul.f32.gmra.mxu0 %v1119
    %v1138 = vpop.f32.mrf.mxu0
    %v1139 = vadd.f32 0.0, %v1138
    %1140 = vdwg.mxu0
    %v1142 = vrot.slane %v1139, 2
    %v1143 = vrot.slane %v1139, 3
    %v1146 = vadd.f32 %v418, %v1142
    %v1147 = vadd.f32 %v419, %v1143
    %v1148 = vxor.u32 %v1146, 2147483648
    %v1149 = vxor.u32 %v1147, 2147483648
    %v1150 = vmul.f32 %v1148, 1.442695
    %v1151 = vpow.pop %v1150
    %v1152 = vmul.f32 %v1149, 1.442695
    %v1153 = vpow.pop %v1152
    %v1154 = vadd.f32 %v1151, 1.0
    %v1155 = vadd.f32 %v1153, 1.0
    %v1156 = vrcp.pop %v1154
    %v1157 = vmul.f32 %v1154, %v1156
    %v1158 = vsub.f32 1.0, %v1157
    %v1159 = vmul.f32 %v1156, %v1158
    %v1160 = vadd.f32 %v1156, %v1159
    %vm1161 = vweird.f32 %v1154
    %vm1162 = vweird.f32 %v1156
    %vm1163 = vmor %vm1161, %vm1162
    %v1164 = vsel %vm1163, %v1156, %v1160
    %v1165 = vand.u32 2147483647, %v1154
    %vm1166 = vcmp.eq.f32.partialorder %v1165, 8.507059e+37
    %v1167 = vand.u32 %v1154, 2147483648
    %v1168 = vor.u32 1.1754944e-38, %v1167
    %v1169 = vsel %vm1166, %v1168, %v1164
    %v1170 = vmul.f32 1.0, %v1169
    %v1171 = vrcp.pop %v1155
    %v1172 = vmul.f32 %v1155, %v1171
    %v1173 = vsub.f32 1.0, %v1172
    %v1174 = vmul.f32 %v1171, %v1173
    %v1175 = vadd.f32 %v1171, %v1174
    %vm1176 = vweird.f32 %v1155
    %vm1177 = vweird.f32 %v1171
    %vm1178 = vmor %vm1176, %vm1177
    %v1179 = vsel %vm1178, %v1171, %v1175
    %v1180 = vand.u32 2147483647, %v1155
    %vm1181 = vcmp.eq.f32.partialorder %v1180, 8.507059e+37
    %v1182 = vand.u32 %v1155, 2147483648
    %v1183 = vor.u32 1.1754944e-38, %v1182
    %v1184 = vsel %vm1181, %v1183, %v1179
    %v1185 = vmul.f32 1.0, %v1184
    %v1186 = vtanh.pop %v1146
    %v1187 = vtanh.pop %v1147
    %v1190 = vrot.slane %v1098, 7
    %v1191 = vrot.slane %v1099, 7
    %v1194 = vmul.f32 %v1170, %v1190
    %v1195 = vmul.f32 %v1185, %v1191
    %1198 = vrot.lane.b32.xlu0 %v1186, 32
    %v1199 = vpop.permute.xlu0 %1198
    %1200 = vrot.lane.b32.xlu0 %v1187, 32
    %v1201 = vpop.permute.xlu0 %1200
    %v1204 = vmul.f32 %v1170, %v1199
    %v1205 = vmul.f32 %v1185, %v1201
    %1208 = vrot.lane.b32.xlu0 %v1204, 32
    %v1209 = vpop.permute.xlu0 %1208
    %1210 = vrot.lane.b32.xlu0 %v1205, 32
    %v1211 = vpop.permute.xlu0 %1210
    %v1214 = vadd.f32 %v1194, %v1209
    %v1215 = vadd.f32 %v1195, %v1211
    %v1216 = vtanh.pop %v1214
    %v1217 = vtanh.pop %v1215
    %1220 = vrot.lane.b32.xlu0 %v1216, 32
    %v1221 = vpop.permute.xlu0 %1220
    %1222 = vrot.lane.b32.xlu0 %v1217, 32
    %v1223 = vpop.permute.xlu0 %1222
    %v1226 = vmul.f32 %v1170, %v1221
    %v1227 = vmul.f32 %v1185, %v1223
    %v1230 = vrot.slane %v1226, 6
    %v1231 = vrot.slane %v1227, 5
    %v1232 = vsel %vm537, %v1231, %v1230
    %1233 = vrot.lane.b32.xlu0 %v1232, 64
    %v1234 = vpop.permute.xlu0 %1233
    %v1235 = vsel %vm430, %v1234, 0
    %1237 = vmatpush.msra.mxu0 0.0
    %1238 = vmatpush.msra.mxu0 0.0
    %1239 = vmatpush.msra.mxu0 0.0
    %1240 = vmatpush.msra.mxu0 0.0
    %1241 = vmatpush.msra.mxu0 0.0
    %1242 = vmatpush.msra.mxu0 0.0
    %1243 = vmatpush.msra.mxu0 0.0
    %1244 = vmatpush.msra.mxu0 0.0
    %1245 = vmatpush.msra.mxu0 0.0
    %1246 = vmatpush.msra.mxu0 0.0
    %1247 = vmatpush.msra.mxu0 0.0
    %1248 = vmatpush.msra.mxu0 0.0
    %1249 = vmatpush.msra.mxu0 %v429
    %1250 = vmatpush.msra.mxu0 %v428
    %1251 = vmatpush.msra.mxu0 %v427
    %1252 = vmatpush.msra.mxu0 %v426
    %1253 = vmatmul.f32.gmra.mxu0 %v1235
    %v1254 = vpop.f32.mrf.mxu0
    %v1255 = vadd.f32 0.0, %v1254
    %1256 = vdwg.mxu0
    %v1258 = vrot.slane %v1255, 1
    %v1259 = vrot.slane %v1255, 2
    %v1262 = vadd.f32 %v424, %v1258
    %v1263 = vadd.f32 %v425, %v1259
    %v1264 = vxor.u32 %v1262, 2147483648
    %v1265 = vxor.u32 %v1263, 2147483648
    %v1266 = vmul.f32 %v1264, 1.442695
    %v1267 = vpow.pop %v1266
    %v1268 = vmul.f32 %v1265, 1.442695
    %v1269 = vpow.pop %v1268
    %v1270 = vadd.f32 %v1267, 1.0
    %v1271 = vadd.f32 %v1269, 1.0
    %v1272 = vrcp.pop %v1270
    %v1273 = vmul.f32 %v1270, %v1272
    %v1274 = vsub.f32 1.0, %v1273
    %v1275 = vmul.f32 %v1272, %v1274
    %v1276 = vadd.f32 %v1272, %v1275
    %vm1277 = vweird.f32 %v1270
    %vm1278 = vweird.f32 %v1272
    %vm1279 = vmor %vm1277, %vm1278
    %v1280 = vsel %vm1279, %v1272, %v1276
    %v1281 = vand.u32 2147483647, %v1270
    %vm1282 = vcmp.eq.f32.partialorder %v1281, 8.507059e+37
    %v1283 = vand.u32 %v1270, 2147483648
    %v1284 = vor.u32 1.1754944e-38, %v1283
    %v1285 = vsel %vm1282, %v1284, %v1280
    %v1286 = vmul.f32 1.0, %v1285
    %v1287 = vrcp.pop %v1271
    %v1288 = vmul.f32 %v1271, %v1287
    %v1289 = vsub.f32 1.0, %v1288
    %v1290 = vmul.f32 %v1287, %v1289
    %v1291 = vadd.f32 %v1287, %v1290
    %vm1292 = vweird.f32 %v1271
    %vm1293 = vweird.f32 %v1287
    %vm1294 = vmor %vm1292, %vm1293
    %v1295 = vsel %vm1294, %v1287, %v1291
    %v1296 = vand.u32 2147483647, %v1271
    %vm1297 = vcmp.eq.f32.partialorder %v1296, 8.507059e+37
    %v1298 = vand.u32 %v1271, 2147483648
    %v1299 = vor.u32 1.1754944e-38, %v1298
    %v1300 = vsel %vm1297, %v1299, %v1295
    %v1301 = vmul.f32 1.0, %v1300
    %v1302 = vtanh.pop %v1262
    %v1303 = vtanh.pop %v1263
    %v1306 = vrot.slane %v1214, 7
    %v1307 = vrot.slane %v1215, 7
    %v1310 = vmul.f32 %v1286, %v1306
    %v1311 = vmul.f32 %v1301, %v1307
    %1314 = vrot.lane.b32.xlu0 %v1302, 32
    %v1315 = vpop.permute.xlu0 %1314
    %1316 = vrot.lane.b32.xlu0 %v1303, 32
    %v1317 = vpop.permute.xlu0 %1316
    %v1320 = vmul.f32 %v1286, %v1315
    %v1321 = vmul.f32 %v1301, %v1317
    %1324 = vrot.lane.b32.xlu0 %v1320, 32
    %v1325 = vpop.permute.xlu0 %1324
    %1326 = vrot.lane.b32.xlu0 %v1321, 32
    %v1327 = vpop.permute.xlu0 %1326
    %v1330 = vadd.f32 %v1310, %v1325
    %v1331 = vadd.f32 %v1311, %v1327
    %v1332 = vtanh.pop %v1330
    %v1333 = vtanh.pop %v1331
    %1336 = vrot.lane.b32.xlu0 %v1332, 32
    %v1337 = vpop.permute.xlu0 %1336
    %1338 = vrot.lane.b32.xlu0 %v1333, 32
    %v1339 = vpop.permute.xlu0 %1338
    %v1342 = vmul.f32 %v1286, %v1337
    %v1343 = vmul.f32 %v1301, %v1339
    %v1345 = vrot.slane %v647, 7
    %v1346 = vrot.slane %v648, 6
    %vm1347 = vcmask 1043459
    %v1348 = vsel %vm1347, %v1346, %v1345
    %v1350 = vrot.slane %v762, 6
    %v1351 = vrot.slane %v763, 5
    %vm1352 = vcmask 1045509
    %v1353 = vsel %vm1352, %v1351, %v1350
    %v1355 = vrot.slane %v878, 5
    %v1356 = vrot.slane %v879, 4
    %vm1357 = vcmask 1047559
    %v1358 = vsel %vm1357, %v1356, %v1355
    %v1361 = vrot.slane %v1110, 3
    %v1362 = vrot.slane %v1111, 2
    %v1363 = vsel %vm1347, %v1362, %v1361
    %v1365 = vrot.slane %v1226, 2
    %v1366 = vrot.slane %v1227, 1
    %v1367 = vsel %vm1352, %v1366, %v1365
    %v1371 = vrot.slane %v1342, 1
    %v1372 = vsel %vm1357, %v1343, %v1371
    %vm1374 = vcmask 1041408
    %v1375 = vsel %vm1374, %v538, %v1348
    %v1376 = vsel %vm102, %v1375, %v1353
    %vm1377 = vcmask 1045504
    %v1378 = vsel %vm1377, %v1376, %v1358
    %v1379 = vsel %vm1374, %v1000, %v1363
    %v1380 = vsel %vm102, %v1379, %v1367
    %v1381 = vsel %vm1377, %v1380, %v1372
    %v1382 = vld [vmem:[#allocation5 + $0x110] sm:$0xff]
    %v1383 = vld [vmem:[#allocation5 + $0x118] sm:$0xff]
    %v1384 = vld [vmem:[#allocation5 + $0x120] sm:$0xff]
    %v1385 = vld [vmem:[#allocation5 + $0x128] sm:$0xff]
    %1388 = vrot.lane.b32.xlu0 %v1378, 64
    %v1389 = vpop.permute.xlu0 %1388
    %1390 = vrot.lane.b32.xlu0 %v1381, 64
    %v1391 = vpop.permute.xlu0 %1390
    %vm1392 = vcmask 130048
    %v1393 = vsel %vm1392, %v1389, 0
    %v1395 = vsel %vm1392, %v1391, 0
    %1397 = vmatpush.msra.mxu0 0.0
    %1398 = vmatpush.msra.mxu0 0.0
    %1399 = vmatpush.msra.mxu0 0.0
    %1400 = vmatpush.msra.mxu0 0.0
    %1401 = vmatpush.msra.mxu0 0.0
    %1402 = vmatpush.msra.mxu0 0.0
    %1403 = vmatpush.msra.mxu0 0.0
    %1404 = vmatpush.msra.mxu0 0.0
    %1405 = vmatpush.msra.mxu0 0.0
    %1406 = vmatpush.msra.mxu0 0.0
    %1407 = vmatpush.msra.mxu0 0.0
    %1408 = vmatpush.msra.mxu0 0.0
    %1409 = vmatpush.msra.mxu0 0.0
    %1410 = vmatpush.msra.mxu0 0.0
    %1411 = vmatpush.msra.mxu0 %v1383
    %1412 = vmatpush.msra.mxu0 %v1382
    %1413 = vmatmul.f32.gmra.mxu0 %v1393
    %v1414 = vpop.f32.mrf.mxu0
    %v1415 = vadd.f32 0.0, %v1414
    %1416 = vmatmul.f32.gmra.mxu0 %v1395
    %v1417 = vpop.f32.mrf.mxu0
    %v1418 = vadd.f32 0.0, %v1417
    %1419 = vdwg.mxu0
    %1420 = vrot.lane.b32.xlu0 %v1378, 48
    %v1421 = vpop.permute.xlu0 %1420
    %1422 = vrot.lane.b32.xlu0 %v1381, 48
    %v1423 = vpop.permute.xlu0 %1422
    %v1424 = vsel %vm1392, %v1421, 0
    %v1426 = vsel %vm1392, %v1423, 0
    %1428 = vmatpush.msra.mxu0 0.0
    %1429 = vmatpush.msra.mxu0 0.0
    %1430 = vmatpush.msra.mxu0 0.0
    %1431 = vmatpush.msra.mxu0 0.0
    %1432 = vmatpush.msra.mxu0 0.0
    %1433 = vmatpush.msra.mxu0 0.0
    %1434 = vmatpush.msra.mxu0 0.0
    %1435 = vmatpush.msra.mxu0 0.0
    %1436 = vmatpush.msra.mxu0 0.0
    %1437 = vmatpush.msra.mxu0 0.0
    %1438 = vmatpush.msra.mxu0 0.0
    %1439 = vmatpush.msra.mxu0 0.0
    %1440 = vmatpush.msra.mxu0 0.0
    %1441 = vmatpush.msra.mxu0 0.0
    %1442 = vmatpush.msra.mxu0 %v1385
    %1443 = vmatpush.msra.mxu0 %v1384
    %1444 = vmatmul.f32.gmra.mxu0 %v1424
    %v1445 = vpop.f32.mrf.mxu0
    %v1446 = vadd.f32 0.0, %v1445
    %1447 = vmatmul.f32.gmra.mxu0 %v1426
    %v1448 = vpop.f32.mrf.mxu0
    %v1449 = vadd.f32 0.0, %v1448
    %1450 = vdwg.mxu0
    %v1452 = vrot.slane %v1449, 6
    %v1454 = vadd.f32 %v1415, %v1452
    %v1455 = vrot.slane %v1449, 2
    %v1457 = vadd.f32 %v1415, %v1455
    %v1459 = vrot.slane %v1446, 6
    %v1461 = vadd.f32 %v1418, %v1459
    %v1462 = vrot.slane %v1446, 2
    %v1464 = vadd.f32 %v1418, %v1462
    %v1465 = vld [vmem:[#allocation5 + $0x130] sm:$0xff]
    %v1466 = vld [vmem:[#allocation5 + $0x138] sm:$0xff]
    %v1467 = vld [vmem:[#allocation5 + $0x140] sm:$0x1]
    %v1468 = vperm.slane %v1467, 0
    %v1469 = vadd.f32 %v1454, %v1468
    %v1470 = vsel %vm1392, 0.0, 0
    %1472 = vmatpush.msra.mxu0 0.0
    %1473 = vmatpush.msra.mxu0 0.0
    %1474 = vmatpush.msra.mxu0 0.0
    %1475 = vmatpush.msra.mxu0 0.0
    %1476 = vmatpush.msra.mxu0 0.0
    %1477 = vmatpush.msra.mxu0 0.0
    %1478 = vmatpush.msra.mxu0 0.0
    %1479 = vmatpush.msra.mxu0 0.0
    %1480 = vmatpush.msra.mxu0 0.0
    %1481 = vmatpush.msra.mxu0 0.0
    %1482 = vmatpush.msra.mxu0 0.0
    %1483 = vmatpush.msra.mxu0 0.0
    %1484 = vmatpush.msra.mxu0 0.0
    %1485 = vmatpush.msra.mxu0 0.0
    %1486 = vmatpush.msra.mxu0 %v1466
    %1487 = vmatpush.msra.mxu0 %v1465
    %1488 = vmatmul.f32.gmra.mxu0 %v1470
    %v1489 = vpop.f32.mrf.mxu0
    %v1490 = vadd.f32 0.0, %v1489
    %1491 = vdwg.mxu0
    %v1492 = vadd.f32 %v1469, %v1490
    %v1493 = vxor.u32 %v1492, 2147483648
    %v1494 = vmul.f32 %v1493, 1.442695
    %v1495 = vpow.pop %v1494
    %v1496 = vadd.f32 %v1495, 1.0
    %v1497 = vrcp.pop %v1496
    %v1498 = vmul.f32 %v1496, %v1497
    %v1499 = vsub.f32 1.0, %v1498
    %v1500 = vmul.f32 %v1497, %v1499
    %v1501 = vadd.f32 %v1497, %v1500
    %vm1502 = vweird.f32 %v1496
    %vm1503 = vweird.f32 %v1497
    %vm1504 = vmor %vm1502, %vm1503
    %v1505 = vsel %vm1504, %v1497, %v1501
    %v1506 = vand.u32 2147483647, %v1496
    %vm1507 = vcmp.eq.f32.partialorder %v1506, 8.507059e+37
    %v1508 = vand.u32 %v1496, 2147483648
    %v1509 = vor.u32 1.1754944e-38, %v1508
    %v1510 = vsel %vm1507, %v1509, %v1505
    %v1511 = vmul.f32 1.0, %v1510
    %v1512 = vtanh.pop %v1492
    %v1513 = vmul.f32 %v1511, 0.0
    %1515 = vrot.lane.b32.xlu0 %v1512, 80
    %v1516 = vpop.permute.xlu0 %1515
    %v1518 = vmul.f32 %v1511, %v1516
    %1520 = vrot.lane.b32.xlu0 %v1518, 16
    %v1521 = vpop.permute.xlu0 %1520
    %v1523 = vadd.f32 %v1513, %v1521
    %v1524 = vtanh.pop %v1523
    %1526 = vrot.lane.b32.xlu0 %v1524, 16
    %v1527 = vpop.permute.xlu0 %1526
    %v1529 = vmul.f32 %v1511, %v1527
    %v1530 = vadd.f32 %v1457, %v1468
    %1532 = vrot.lane.b32.xlu0 %v1529, 96
    %v1533 = vpop.permute.xlu0 %1532
    %v1534 = vsel %vm1392, %v1533, 0
    %1536 = vmatpush.msra.mxu0 0.0
    %1537 = vmatpush.msra.mxu0 0.0
    %1538 = vmatpush.msra.mxu0 0.0
    %1539 = vmatpush.msra.mxu0 0.0
    %1540 = vmatpush.msra.mxu0 0.0
    %1541 = vmatpush.msra.mxu0 0.0
    %1542 = vmatpush.msra.mxu0 0.0
    %1543 = vmatpush.msra.mxu0 0.0
    %1544 = vmatpush.msra.mxu0 0.0
    %1545 = vmatpush.msra.mxu0 0.0
    %1546 = vmatpush.msra.mxu0 0.0
    %1547 = vmatpush.msra.mxu0 0.0
    %1548 = vmatpush.msra.mxu0 0.0
    %1549 = vmatpush.msra.mxu0 0.0
    %1550 = vmatpush.msra.mxu0 %v1466
    %1551 = vmatpush.msra.mxu0 %v1465
    %1552 = vmatmul.f32.gmra.mxu0 %v1534
    %v1553 = vpop.f32.mrf.mxu0
    %v1554 = vadd.f32 0.0, %v1553
    %1555 = vdwg.mxu0
    %v1557 = vrot.slane %v1554, 6
    %v1559 = vadd.f32 %v1530, %v1557
    %v1560 = vxor.u32 %v1559, 2147483648
    %v1561 = vmul.f32 %v1560, 1.442695
    %v1562 = vpow.pop %v1561
    %v1563 = vadd.f32 %v1562, 1.0
    %v1564 = vrcp.pop %v1563
    %v1565 = vmul.f32 %v1563, %v1564
    %v1566 = vsub.f32 1.0, %v1565
    %v1567 = vmul.f32 %v1564, %v1566
    %v1568 = vadd.f32 %v1564, %v1567
    %vm1569 = vweird.f32 %v1563
    %vm1570 = vweird.f32 %v1564
    %vm1571 = vmor %vm1569, %vm1570
    %v1572 = vsel %vm1571, %v1564, %v1568
    %v1573 = vand.u32 2147483647, %v1563
    %vm1574 = vcmp.eq.f32.partialorder %v1573, 8.507059e+37
    %v1575 = vand.u32 %v1563, 2147483648
    %v1576 = vor.u32 1.1754944e-38, %v1575
    %v1577 = vsel %vm1574, %v1576, %v1572
    %v1578 = vmul.f32 1.0, %v1577
    %v1579 = vtanh.pop %v1559
    %v1581 = vrot.slane %v1523, 6
    %v1583 = vmul.f32 %v1578, %v1581
    %1585 = vrot.lane.b32.xlu0 %v1579, 80
    %v1586 = vpop.permute.xlu0 %1585
    %v1588 = vmul.f32 %v1578, %v1586
    %1590 = vrot.lane.b32.xlu0 %v1588, 16
    %v1591 = vpop.permute.xlu0 %1590
    %v1593 = vadd.f32 %v1583, %v1591
    %v1594 = vtanh.pop %v1593
    %1596 = vrot.lane.b32.xlu0 %v1594, 16
    %v1597 = vpop.permute.xlu0 %1596
    %v1599 = vmul.f32 %v1578, %v1597
    %v1601 = vrot.slane %v1599, 2
    %1602 = vrot.lane.b32.xlu0 %v1601, 96
    %v1603 = vpop.permute.xlu0 %1602
    %v1604 = vsel %vm1392, %v1603, 0
    %1606 = vmatpush.msra.mxu0 0.0
    %1607 = vmatpush.msra.mxu0 0.0
    %1608 = vmatpush.msra.mxu0 0.0
    %1609 = vmatpush.msra.mxu0 0.0
    %1610 = vmatpush.msra.mxu0 0.0
    %1611 = vmatpush.msra.mxu0 0.0
    %1612 = vmatpush.msra.mxu0 0.0
    %1613 = vmatpush.msra.mxu0 0.0
    %1614 = vmatpush.msra.mxu0 0.0
    %1615 = vmatpush.msra.mxu0 0.0
    %1616 = vmatpush.msra.mxu0 0.0
    %1617 = vmatpush.msra.mxu0 0.0
    %1618 = vmatpush.msra.mxu0 0.0
    %1619 = vmatpush.msra.mxu0 0.0
    %1620 = vmatpush.msra.mxu0 %v1466
    %1621 = vmatpush.msra.mxu0 %v1465
    %1622 = vmatmul.f32.gmra.mxu0 %v1604
    %v1623 = vpop.f32.mrf.mxu0
    %v1624 = vadd.f32 0.0, %v1623
    %1625 = vdwg.mxu0
    %v1627 = vrot.slane %v1624, 4
    %v1629 = vadd.f32 %v1469, %v1627
    %v1630 = vxor.u32 %v1629, 2147483648
    %v1631 = vmul.f32 %v1630, 1.442695
    %v1632 = vpow.pop %v1631
    %v1633 = vadd.f32 %v1632, 1.0
    %v1634 = vrcp.pop %v1633
    %v1635 = vmul.f32 %v1633, %v1634
    %v1636 = vsub.f32 1.0, %v1635
    %v1637 = vmul.f32 %v1634, %v1636
    %v1638 = vadd.f32 %v1634, %v1637
    %vm1639 = vweird.f32 %v1633
    %vm1640 = vweird.f32 %v1634
    %vm1641 = vmor %vm1639, %vm1640
    %v1642 = vsel %vm1641, %v1634, %v1638
    %v1643 = vand.u32 2147483647, %v1633
    %vm1644 = vcmp.eq.f32.partialorder %v1643, 8.507059e+37
    %v1645 = vand.u32 %v1633, 2147483648
    %v1646 = vor.u32 1.1754944e-38, %v1645
    %v1647 = vsel %vm1644, %v1646, %v1642
    %v1648 = vmul.f32 1.0, %v1647
    %v1649 = vtanh.pop %v1629
    %v1651 = vrot.slane %v1593, 6
    %v1653 = vmul.f32 %v1648, %v1651
    %1655 = vrot.lane.b32.xlu0 %v1649, 80
    %v1656 = vpop.permute.xlu0 %1655
    %v1658 = vmul.f32 %v1648, %v1656
    %1660 = vrot.lane.b32.xlu0 %v1658, 16
    %v1661 = vpop.permute.xlu0 %1660
    %v1663 = vadd.f32 %v1653, %v1661
    %v1664 = vtanh.pop %v1663
    %1666 = vrot.lane.b32.xlu0 %v1664, 16
    %v1667 = vpop.permute.xlu0 %1666
    %v1669 = vmul.f32 %v1648, %v1667
    %v1671 = vrot.slane %v1669, 4
    %1672 = vrot.lane.b32.xlu0 %v1671, 96
    %v1673 = vpop.permute.xlu0 %1672
    %v1674 = vsel %vm1392, %v1673, 0
    %1676 = vmatpush.msra.mxu0 0.0
    %1677 = vmatpush.msra.mxu0 0.0
    %1678 = vmatpush.msra.mxu0 0.0
    %1679 = vmatpush.msra.mxu0 0.0
    %1680 = vmatpush.msra.mxu0 0.0
    %1681 = vmatpush.msra.mxu0 0.0
    %1682 = vmatpush.msra.mxu0 0.0
    %1683 = vmatpush.msra.mxu0 0.0
    %1684 = vmatpush.msra.mxu0 0.0
    %1685 = vmatpush.msra.mxu0 0.0
    %1686 = vmatpush.msra.mxu0 0.0
    %1687 = vmatpush.msra.mxu0 0.0
    %1688 = vmatpush.msra.mxu0 0.0
    %1689 = vmatpush.msra.mxu0 0.0
    %1690 = vmatpush.msra.mxu0 %v1466
    %1691 = vmatpush.msra.mxu0 %v1465
    %1692 = vmatmul.f32.gmra.mxu0 %v1674
    %v1693 = vpop.f32.mrf.mxu0
    %v1694 = vadd.f32 0.0, %v1693
    %1695 = vdwg.mxu0
    %v1697 = vrot.slane %v1694, 2
    %v1699 = vadd.f32 %v1530, %v1697
    %v1700 = vxor.u32 %v1699, 2147483648
    %v1701 = vmul.f32 %v1700, 1.442695
    %v1702 = vpow.pop %v1701
    %v1703 = vadd.f32 %v1702, 1.0
    %v1704 = vrcp.pop %v1703
    %v1705 = vmul.f32 %v1703, %v1704
    %v1706 = vsub.f32 1.0, %v1705
    %v1707 = vmul.f32 %v1704, %v1706
    %v1708 = vadd.f32 %v1704, %v1707
    %vm1709 = vweird.f32 %v1703
    %vm1710 = vweird.f32 %v1704
    %vm1711 = vmor %vm1709, %vm1710
    %v1712 = vsel %vm1711, %v1704, %v1708
    %v1713 = vand.u32 2147483647, %v1703
    %vm1714 = vcmp.eq.f32.partialorder %v1713, 8.507059e+37
    %v1715 = vand.u32 %v1703, 2147483648
    %v1716 = vor.u32 1.1754944e-38, %v1715
    %v1717 = vsel %vm1714, %v1716, %v1712
    %v1718 = vmul.f32 1.0, %v1717
    %v1719 = vtanh.pop %v1699
    %v1721 = vrot.slane %v1663, 6
    %v1723 = vmul.f32 %v1718, %v1721
    %1725 = vrot.lane.b32.xlu0 %v1719, 80
    %v1726 = vpop.permute.xlu0 %1725
    %v1728 = vmul.f32 %v1718, %v1726
    %1730 = vrot.lane.b32.xlu0 %v1728, 16
    %v1731 = vpop.permute.xlu0 %1730
    %v1733 = vadd.f32 %v1723, %v1731
    %v1734 = vtanh.pop %v1733
    %1736 = vrot.lane.b32.xlu0 %v1734, 16
    %v1737 = vpop.permute.xlu0 %1736
    %v1739 = vmul.f32 %v1718, %v1737
    %v1740 = vadd.f32 %v1461, %v1468
    %v1742 = vrot.slane %v1739, 6
    %1743 = vrot.lane.b32.xlu0 %v1742, 96
    %v1744 = vpop.permute.xlu0 %1743
    %v1745 = vsel %vm1392, %v1744, 0
    %1747 = vmatpush.msra.mxu0 0.0
    %1748 = vmatpush.msra.mxu0 0.0
    %1749 = vmatpush.msra.mxu0 0.0
    %1750 = vmatpush.msra.mxu0 0.0
    %1751 = vmatpush.msra.mxu0 0.0
    %1752 = vmatpush.msra.mxu0 0.0
    %1753 = vmatpush.msra.mxu0 0.0
    %1754 = vmatpush.msra.mxu0 0.0
    %1755 = vmatpush.msra.mxu0 0.0
    %1756 = vmatpush.msra.mxu0 0.0
    %1757 = vmatpush.msra.mxu0 0.0
    %1758 = vmatpush.msra.mxu0 0.0
    %1759 = vmatpush.msra.mxu0 0.0
    %1760 = vmatpush.msra.mxu0 0.0
    %1761 = vmatpush.msra.mxu0 %v1466
    %1762 = vmatpush.msra.mxu0 %v1465
    %1763 = vmatmul.f32.gmra.mxu0 %v1745
    %v1764 = vpop.f32.mrf.mxu0
    %v1765 = vadd.f32 0.0, %v1764
    %1766 = vdwg.mxu0
    %v1767 = vadd.f32 %v1740, %v1765
    %v1768 = vxor.u32 %v1767, 2147483648
    %v1769 = vmul.f32 %v1768, 1.442695
    %v1770 = vpow.pop %v1769
    %v1771 = vadd.f32 %v1770, 1.0
    %v1772 = vrcp.pop %v1771
    %v1773 = vmul.f32 %v1771, %v1772
    %v1774 = vsub.f32 1.0, %v1773
    %v1775 = vmul.f32 %v1772, %v1774
    %v1776 = vadd.f32 %v1772, %v1775
    %vm1777 = vweird.f32 %v1771
    %vm1778 = vweird.f32 %v1772
    %vm1779 = vmor %vm1777, %vm1778
    %v1780 = vsel %vm1779, %v1772, %v1776
    %v1781 = vand.u32 2147483647, %v1771
    %vm1782 = vcmp.eq.f32.partialorder %v1781, 8.507059e+37
    %v1783 = vand.u32 %v1771, 2147483648
    %v1784 = vor.u32 1.1754944e-38, %v1783
    %v1785 = vsel %vm1782, %v1784, %v1780
    %v1786 = vmul.f32 1.0, %v1785
    %v1787 = vtanh.pop %v1767
    %v1789 = vrot.slane %v1733, 6
    %v1791 = vmul.f32 %v1786, %v1789
    %1793 = vrot.lane.b32.xlu0 %v1787, 80
    %v1794 = vpop.permute.xlu0 %1793
    %v1796 = vmul.f32 %v1786, %v1794
    %1798 = vrot.lane.b32.xlu0 %v1796, 16
    %v1799 = vpop.permute.xlu0 %1798
    %v1801 = vadd.f32 %v1791, %v1799
    %v1802 = vtanh.pop %v1801
    %1804 = vrot.lane.b32.xlu0 %v1802, 16
    %v1805 = vpop.permute.xlu0 %1804
    %v1807 = vmul.f32 %v1786, %v1805
    %v1808 = vadd.f32 %v1464, %v1468
    %1810 = vrot.lane.b32.xlu0 %v1807, 96
    %v1811 = vpop.permute.xlu0 %1810
    %v1812 = vsel %vm1392, %v1811, 0
    %1814 = vmatpush.msra.mxu0 0.0
    %1815 = vmatpush.msra.mxu0 0.0
    %1816 = vmatpush.msra.mxu0 0.0
    %1817 = vmatpush.msra.mxu0 0.0
    %1818 = vmatpush.msra.mxu0 0.0
    %1819 = vmatpush.msra.mxu0 0.0
    %1820 = vmatpush.msra.mxu0 0.0
    %1821 = vmatpush.msra.mxu0 0.0
    %1822 = vmatpush.msra.mxu0 0.0
    %1823 = vmatpush.msra.mxu0 0.0
    %1824 = vmatpush.msra.mxu0 0.0
    %1825 = vmatpush.msra.mxu0 0.0
    %1826 = vmatpush.msra.mxu0 0.0
    %1827 = vmatpush.msra.mxu0 0.0
    %1828 = vmatpush.msra.mxu0 %v1466
    %1829 = vmatpush.msra.mxu0 %v1465
    %1830 = vmatmul.f32.gmra.mxu0 %v1812
    %v1831 = vpop.f32.mrf.mxu0
    %v1832 = vadd.f32 0.0, %v1831
    %1833 = vdwg.mxu0
    %v1835 = vrot.slane %v1832, 6
    %v1837 = vadd.f32 %v1808, %v1835
    %v1838 = vxor.u32 %v1837, 2147483648
    %v1839 = vmul.f32 %v1838, 1.442695
    %v1840 = vpow.pop %v1839
    %v1841 = vadd.f32 %v1840, 1.0
    %v1842 = vrcp.pop %v1841
    %v1843 = vmul.f32 %v1841, %v1842
    %v1844 = vsub.f32 1.0, %v1843
    %v1845 = vmul.f32 %v1842, %v1844
    %v1846 = vadd.f32 %v1842, %v1845
    %vm1847 = vweird.f32 %v1841
    %vm1848 = vweird.f32 %v1842
    %vm1849 = vmor %vm1847, %vm1848
    %v1850 = vsel %vm1849, %v1842, %v1846
    %v1851 = vand.u32 2147483647, %v1841
    %vm1852 = vcmp.eq.f32.partialorder %v1851, 8.507059e+37
    %v1853 = vand.u32 %v1841, 2147483648
    %v1854 = vor.u32 1.1754944e-38, %v1853
    %v1855 = vsel %vm1852, %v1854, %v1850
    %v1856 = vmul.f32 1.0, %v1855
    %v1857 = vtanh.pop %v1837
    %v1859 = vrot.slane %v1801, 6
    %v1861 = vmul.f32 %v1856, %v1859
    %1863 = vrot.lane.b32.xlu0 %v1857, 80
    %v1864 = vpop.permute.xlu0 %1863
    %v1866 = vmul.f32 %v1856, %v1864
    %1868 = vrot.lane.b32.xlu0 %v1866, 16
    %v1869 = vpop.permute.xlu0 %1868
    %v1871 = vadd.f32 %v1861, %v1869
    %v1872 = vtanh.pop %v1871
    %1874 = vrot.lane.b32.xlu0 %v1872, 16
    %v1875 = vpop.permute.xlu0 %1874
    %v1877 = vmul.f32 %v1856, %v1875
    %v1879 = vrot.slane %v1877, 2
    %1880 = vrot.lane.b32.xlu0 %v1879, 96
    %v1881 = vpop.permute.xlu0 %1880
    %v1882 = vsel %vm1392, %v1881, 0
    %1884 = vmatpush.msra.mxu0 0.0
    %1885 = vmatpush.msra.mxu0 0.0
    %1886 = vmatpush.msra.mxu0 0.0
    %1887 = vmatpush.msra.mxu0 0.0
    %1888 = vmatpush.msra.mxu0 0.0
    %1889 = vmatpush.msra.mxu0 0.0
    %1890 = vmatpush.msra.mxu0 0.0
    %1891 = vmatpush.msra.mxu0 0.0
    %1892 = vmatpush.msra.mxu0 0.0
    %1893 = vmatpush.msra.mxu0 0.0
    %1894 = vmatpush.msra.mxu0 0.0
    %1895 = vmatpush.msra.mxu0 0.0
    %1896 = vmatpush.msra.mxu0 0.0
    %1897 = vmatpush.msra.mxu0 0.0
    %1898 = vmatpush.msra.mxu0 %v1466
    %1899 = vmatpush.msra.mxu0 %v1465
    %1900 = vmatmul.f32.gmra.mxu0 %v1882
    %v1901 = vpop.f32.mrf.mxu0
    %v1902 = vadd.f32 0.0, %v1901
    %1903 = vdwg.mxu0
    %v1905 = vrot.slane %v1902, 4
    %v1907 = vadd.f32 %v1740, %v1905
    %v1908 = vxor.u32 %v1907, 2147483648
    %v1909 = vmul.f32 %v1908, 1.442695
    %v1910 = vpow.pop %v1909
    %v1911 = vadd.f32 %v1910, 1.0
    %v1912 = vrcp.pop %v1911
    %v1913 = vmul.f32 %v1911, %v1912
    %v1914 = vsub.f32 1.0, %v1913
    %v1915 = vmul.f32 %v1912, %v1914
    %v1916 = vadd.f32 %v1912, %v1915
    %vm1917 = vweird.f32 %v1911
    %vm1918 = vweird.f32 %v1912
    %vm1919 = vmor %vm1917, %vm1918
    %v1920 = vsel %vm1919, %v1912, %v1916
    %v1921 = vand.u32 2147483647, %v1911
    %vm1922 = vcmp.eq.f32.partialorder %v1921, 8.507059e+37
    %v1923 = vand.u32 %v1911, 2147483648
    %v1924 = vor.u32 1.1754944e-38, %v1923
    %v1925 = vsel %vm1922, %v1924, %v1920
    %v1926 = vmul.f32 1.0, %v1925
    %v1927 = vtanh.pop %v1907
    %v1929 = vrot.slane %v1871, 6
    %v1931 = vmul.f32 %v1926, %v1929
    %1933 = vrot.lane.b32.xlu0 %v1927, 80
    %v1934 = vpop.permute.xlu0 %1933
    %v1936 = vmul.f32 %v1926, %v1934
    %1938 = vrot.lane.b32.xlu0 %v1936, 16
    %v1939 = vpop.permute.xlu0 %1938
    %v1941 = vadd.f32 %v1931, %v1939
    %v1942 = vtanh.pop %v1941
    %1944 = vrot.lane.b32.xlu0 %v1942, 16
    %v1945 = vpop.permute.xlu0 %1944
    %v1947 = vmul.f32 %v1926, %v1945
    %v1949 = vrot.slane %v1947, 4
    %1950 = vrot.lane.b32.xlu0 %v1949, 96
    %v1951 = vpop.permute.xlu0 %1950
    %v1952 = vsel %vm1392, %v1951, 0
    %1954 = vmatpush.msra.mxu0 0.0
    %1955 = vmatpush.msra.mxu0 0.0
    %1956 = vmatpush.msra.mxu0 0.0
    %1957 = vmatpush.msra.mxu0 0.0
    %1958 = vmatpush.msra.mxu0 0.0
    %1959 = vmatpush.msra.mxu0 0.0
    %1960 = vmatpush.msra.mxu0 0.0
    %1961 = vmatpush.msra.mxu0 0.0
    %1962 = vmatpush.msra.mxu0 0.0
    %1963 = vmatpush.msra.mxu0 0.0
    %1964 = vmatpush.msra.mxu0 0.0
    %1965 = vmatpush.msra.mxu0 0.0
    %1966 = vmatpush.msra.mxu0 0.0
    %1967 = vmatpush.msra.mxu0 0.0
    %1968 = vmatpush.msra.mxu0 %v1466
    %1969 = vmatpush.msra.mxu0 %v1465
    %1970 = vmatmul.f32.gmra.mxu0 %v1952
    %v1971 = vpop.f32.mrf.mxu0
    %v1972 = vadd.f32 0.0, %v1971
    %1973 = vdwg.mxu0
    %v1975 = vrot.slane %v1972, 2
    %v1977 = vadd.f32 %v1808, %v1975
    %v1978 = vxor.u32 %v1977, 2147483648
    %v1979 = vmul.f32 %v1978, 1.442695
    %v1980 = vpow.pop %v1979
    %v1981 = vadd.f32 %v1980, 1.0
    %v1982 = vrcp.pop %v1981
    %v1983 = vmul.f32 %v1981, %v1982
    %v1984 = vsub.f32 1.0, %v1983
    %v1985 = vmul.f32 %v1982, %v1984
    %v1986 = vadd.f32 %v1982, %v1985
    %vm1987 = vweird.f32 %v1981
    %vm1988 = vweird.f32 %v1982
    %vm1989 = vmor %vm1987, %vm1988
    %v1990 = vsel %vm1989, %v1982, %v1986
    %v1991 = vand.u32 2147483647, %v1981
    %vm1992 = vcmp.eq.f32.partialorder %v1991, 8.507059e+37
    %v1993 = vand.u32 %v1981, 2147483648
    %v1994 = vor.u32 1.1754944e-38, %v1993
    %v1995 = vsel %vm1992, %v1994, %v1990
    %v1996 = vmul.f32 1.0, %v1995
    %v1997 = vtanh.pop %v1977
    %v1999 = vrot.slane %v1941, 6
    %v2001 = vmul.f32 %v1996, %v1999
    %2003 = vrot.lane.b32.xlu0 %v1997, 80
    %v2004 = vpop.permute.xlu0 %2003
    %v2006 = vmul.f32 %v1996, %v2004
    %2008 = vrot.lane.b32.xlu0 %v2006, 16
    %v2009 = vpop.permute.xlu0 %2008
    %v2011 = vadd.f32 %v2001, %v2009
    %v2012 = vtanh.pop %v2011
    %2014 = vrot.lane.b32.xlu0 %v2012, 16
    %v2015 = vpop.permute.xlu0 %2014
    %v2017 = vmul.f32 %v1996, %v2015
    %v2018 = vld [vmem:[#allocation5 + $0x148] sm:$0x1]
    %v2019 = vperm.slane %v2018, 0
    %2021 = vrot.lane.b32.xlu0 %v2019, 64
    %v2022 = vpop.permute.xlu0 %2021
    %v2024 = vadd.f32 %v1464, %v2022
    %v2025 = vxor.u32 %v2024, 2147483648
    %v2026 = vmul.f32 %v2025, 1.442695
    %v2027 = vpow.pop %v2026
    %v2028 = vadd.f32 %v2027, 1.0
    %v2029 = vrcp.pop %v2028
    %v2030 = vmul.f32 %v2028, %v2029
    %v2031 = vsub.f32 1.0, %v2030
    %v2032 = vmul.f32 %v2029, %v2031
    %v2033 = vadd.f32 %v2029, %v2032
    %vm2034 = vweird.f32 %v2028
    %vm2035 = vweird.f32 %v2029
    %vm2036 = vmor %vm2034, %vm2035
    %v2037 = vsel %vm2036, %v2029, %v2033
    %v2038 = vand.u32 2147483647, %v2028
    %vm2039 = vcmp.eq.f32.partialorder %v2038, 8.507059e+37
    %v2040 = vand.u32 %v2028, 2147483648
    %v2041 = vor.u32 1.1754944e-38, %v2040
    %v2042 = vsel %vm2039, %v2041, %v2037
    %v2043 = vmul.f32 1.0, %v2042
    %v2044 = vtanh.pop %v2024
    %2046 = vrot.lane.b32.xlu0 %v2044, 80
    %v2047 = vpop.permute.xlu0 %2046
    %v2049 = vmul.f32 %v2043, %v2047
    %v2050 = vtanh.pop %v2049
    %2052 = vrot.lane.b32.xlu0 %v2050, 32
    %v2053 = vpop.permute.xlu0 %2052
    %v2055 = vmul.f32 %v2043, %v2053
    %2057 = vrot.lane.b32.xlu0 %v2017, 96
    %v2058 = vpop.permute.xlu0 %2057
    %2061 = vrot.lane.b32.xlu0 %v2055, 48
    %v2062 = vpop.permute.xlu0 %2061
    %v2066 = vsel %vm1357, %v338, %v337
    %2067 = vrot.lane.b32.xlu0 %v2066, 32
    %v2068 = vpop.permute.xlu0 %2067
    %v2070 = vsel %vm1392, %v2058, %v2062
    %v2071 = vsel %vm430, %v2070, %v2068
    %vm2072 = vcmask 523264
    %v2073 = vsel %vm2072, %v2071, %v2068
    %v2074 = vld [vmem:[#allocation5 + $0x150] sm:$0xff]
    %v2075 = vld [vmem:[#allocation5 + $0x158] sm:$0xff]
    %v2076 = vld [vmem:[#allocation5 + $0x160] sm:$0xff]
    %v2077 = vld [vmem:[#allocation5 + $0x168] sm:$0xff]
    %v2078 = vld [vmem:[#allocation5 + $0x170] sm:$0xff]
    %v2079 = vld [vmem:[#allocation5 + $0x178] sm:$0xff]
    %v2080 = vld [vmem:[#allocation5 + $0x180] sm:$0xff]
    %v2081 = vld [vmem:[#allocation5 + $0x188] sm:$0xff]
    %v2082 = vld [vmem:[#allocation5 + $0x190] sm:$0xf]
    %v2083 = vld [vmem:[#allocation5 + $0x198] sm:$0x1]
    %v2084 = vperm.slane %v2083, 0
    %v2086 = vrot.slane %v2073, 6
    %vm2087 = vcmask 556032
    %v2088 = vsel %vm2087, %v2086, 0
    %v2091 = vsel %vm102, %v2082, 0
    %2093 = vmatpush.msra.mxu0 0.0
    %2094 = vmatpush.msra.mxu0 0.0
    %2095 = vmatpush.msra.mxu0 0.0
    %2096 = vmatpush.msra.mxu0 0.0
    %2097 = vmatpush.msra.mxu0 0.0
    %2098 = vmatpush.msra.mxu0 0.0
    %2099 = vmatpush.msra.mxu0 0.0
    %2100 = vmatpush.msra.mxu0 %v2091
    %2101 = vmatpush.msra.mxu0 %v2081
    %2102 = vmatpush.msra.mxu0 %v2080
    %2103 = vmatpush.msra.mxu0 %v2079
    %2104 = vmatpush.msra.mxu0 %v2078
    %2105 = vmatpush.msra.mxu0 %v2077
    %2106 = vmatpush.msra.mxu0 %v2076
    %2107 = vmatpush.msra.mxu0 %v2075
    %2108 = vmatpush.msra.mxu0 %v2074
    %2109 = vmatmul.f32.gmra.mxu0 %v2088
    %v2110 = vpop.f32.mrf.mxu0
    %v2111 = vadd.f32 %v2084, %v2110
    %2112 = vdwg.mxu0
    %v2113 = vmul.f32 %v2111, 0.5
    %v2114 = vmul.f32 %v2111, 0.70710677
    %vm2115 = vcmp.ge.f32.partialorder %v2114, 0.0
    %v2116 = vsel %vm2115, 1.0, -1.0
    %v2117 = vand.u32 2147483647, %v2114
    %v2118 = vmul.f32 %v2117, 0.3275911
    %v2119 = vadd.f32 %v2118, 1.0
    %v2120 = vrcp.pop %v2119
    %v2121 = vmul.f32 %v2120, 1.0614054
    %v2122 = vadd.f32 %v2121, -1.4531521
    %v2123 = vmul.f32 %v2122, %v2120
    %v2124 = vadd.f32 %v2123, 1.4214138
    %v2125 = vmul.f32 %v2124, %v2120
    %v2126 = vadd.f32 %v2125, -0.28449672
    %v2127 = vmul.f32 %v2126, %v2120
    %v2128 = vadd.f32 %v2127, 0.2548296
    %v2129 = vmul.f32 %v2128, %v2120
    %v2130 = vsub.f32 0.0, %v2117
    %v2131 = vmul.f32 %v2130, %v2117
    %v2132 = vmul.f32 %v2131, 1.442695
    %v2133 = vpow.pop %v2132
    %v2134 = vmul.f32 %v2129, %v2133
    %v2135 = vsub.f32 1.0, %v2134
    %v2136 = vmul.f32 %v2116, %v2135
    %v2137 = vadd.f32 %v2136, 1.0
    %v2138 = vmul.f32 %v2113, %v2137
    %v2139 = vld [vmem:[#allocation5 + $0x1a0] sm:$0xff]
    %v2140 = vld [vmem:[#allocation5 + $0x1a8] sm:$0xff]
    %v2141 = vld [vmem:[#allocation5 + $0x1b0] sm:$0xff]
    %v2142 = vld [vmem:[#allocation5 + $0x1b8] sm:$0xff]
    %v2143 = vld [vmem:[#allocation5 + $0x1c0] sm:$0x1]
    %v2144 = vperm.slane %v2143, 0
    %v2146 = vsel %vm430, %v2138, 0
    %2148 = vmatpush.msra.mxu0 0.0
    %2149 = vmatpush.msra.mxu0 0.0
    %2150 = vmatpush.msra.mxu0 0.0
    %2151 = vmatpush.msra.mxu0 0.0
    %2152 = vmatpush.msra.mxu0 0.0
    %2153 = vmatpush.msra.mxu0 0.0
    %2154 = vmatpush.msra.mxu0 0.0
    %2155 = vmatpush.msra.mxu0 0.0
    %2156 = vmatpush.msra.mxu0 0.0
    %2157 = vmatpush.msra.mxu0 0.0
    %2158 = vmatpush.msra.mxu0 0.0
    %2159 = vmatpush.msra.mxu0 0.0
    %2160 = vmatpush.msra.mxu0 %v2142
    %2161 = vmatpush.msra.mxu0 %v2141
    %2162 = vmatpush.msra.mxu0 %v2140
    %2163 = vmatpush.msra.mxu0 %v2139
    %2164 = vmatmul.f32.gmra.mxu0 %v2146
    %v2165 = vpop.f32.mrf.mxu0
    %v2166 = vadd.f32 %v2144, %v2165
    %2167 = vdwg.mxu0
    %v2168 = vmax.f32 %v2166, 0.0
    %2169 = vst [vmem:[#allocation7] sm:$0x3] %v2168
    // Predicated region
    $region18: #{forward.1} parent=1 // pred_check
      _
    $region19: #{forward.1} parent=1 // pred_check_branch
      %2171 = sbr.rel (0) target = $region21
    $region20: #{forward.1} parent=1 // pred_region
      %2173 = vsyncadd [#allocation4], 0
      %s2175 = sshll.u32 [#allocation7], 4
      %s2176 = int_to_ptr.vmem [resolvable:$true] %s2175
      %s2177 = sshll.u32 %s2, 4
      %s2178 = int_to_ptr.hbm [resolvable:$true] %s2177
      %2180 = dma.vmem_to_hbm [thread:$0]  %s2176, 32, %s2178, [#allocation4]
    $region21: #{forward.1} parent=1 // pred_fallthru
      _
    // Predicated region
    $region22: #{forward.1} parent=1 // pred_check
      _
    $region23: #{forward.1} parent=1 // pred_check_branch
      %2182 = sbr.rel (0) target = $region25
    $region24: #{forward.1} parent=1 // pred_region
      %2184 = dma.done [#allocation4], 32
    $region25: #{forward.1} parent=1 // pred_fallthru
      _
    %2185 = vsyncpa [#allocation3], 1
    %2186 = vsyncpa [#allocation6], 1
    %2187 = vsyncpa [#allocation4], 1

</llo_original>
